<compile_context>
chip_gen: v6e
topology: v6e:2x2x1
jax: 0.10.0
libtpu: 0.0.40
codegen_flags: <defaults>
</compile_context>

<pallas_src>
import functools

import jax
import jax.numpy as jnp
from jax.experimental import pallas as pl
from jax.experimental.pallas import tpu as pltpu


def _layer_norm(x, gamma, beta, eps):
    """Two-pass LayerNorm over the last axis (x is f32, gamma/beta (1, D))."""
    mean = jnp.mean(x, axis=-1, keepdims=True)
    xc = x - mean
    var = jnp.mean(xc * xc, axis=-1, keepdims=True)
    return xc * jax.lax.rsqrt(var + eps) * gamma + beta


def _encoder_block_kernel(x_ref,
                          ln1_g_ref, ln1_b_ref,
                          wqkv_ref, bqkv_ref, wo_ref, bo_ref,
                          ln2_g_ref, ln2_b_ref,
                          w1_ref, b1_ref, w2_ref, b2_ref,
                          out_ref, cache_ref,
                          *, n_heads, eps):
    # One grid step == one batch element.  x block: (1, T, D).
    x = x_ref[0].astype(jnp.float32)                         # (T, D), f32
    T, D = x.shape
    dk = D // n_heads
    scale = dk ** -0.5
    cdt = wqkv_ref.dtype                                     # MXU dtype (bf16)

    # ---- LN1 (+ residual stash, + cache output) --------------------------
    residual = x
    xn = _layer_norm(x, ln1_g_ref[...], ln1_b_ref[...], eps)  # (T, D), f32
    cache_ref[0] = xn.astype(cache_ref.dtype)                 # new_cache['input_san']

    # ---- Fused QKV projection: one (T, D) @ (D, 3D) matmul ----------------
    qkv = jnp.dot(xn.astype(cdt), wqkv_ref[...],
                  preferred_element_type=jnp.float32) + bqkv_ref[...]  # (T, 3D)
    q = qkv[:, :D] * scale                                    # f32 scale, D-aligned slice
    k = qkv[:, D:2 * D]
    v = qkv[:, 2 * D:]

    # (T, D) -> (H, T, dk): split heads on the lane dim, batch heads leading.
    qh = jnp.moveaxis(q.reshape(T, n_heads, dk), 1, 0)
    kh = jnp.moveaxis(k.reshape(T, n_heads, dk), 1, 0)
    vh = jnp.moveaxis(v.reshape(T, n_heads, dk), 1, 0)

    # ---- Scaled dot-product attention (batched over heads) ---------------
    s = jnp.einsum('hqd,hkd->hqk', qh.astype(cdt), kh.astype(cdt),
                   preferred_element_type=jnp.float32)        # (H, T, T)
    s = s - jnp.max(s, axis=-1, keepdims=True)
    p = jnp.exp(s)
    p = p * pl.reciprocal(jnp.sum(p, axis=-1, keepdims=True), approx=True)
    ctx = jnp.einsum('hqk,hkd->hqd', p.astype(cdt), vh.astype(cdt),
                     preferred_element_type=jnp.float32)      # (H, T, dk)

    # ---- Output projection: repack heads, single (T, D) @ (D, D) matmul ---
    ctx2 = jnp.moveaxis(ctx, 0, 1).reshape(T, D)              # (T, D)
    attn = jnp.dot(ctx2.astype(cdt), wo_ref[...],
                   preferred_element_type=jnp.float32) + bo_ref[...]

    # ---- residual 1 --------------------------------------------------------
    x2 = attn + residual

    # ---- LN2 + FFN ---------------------------------------------------------
    xn2 = _layer_norm(x2, ln2_g_ref[...], ln2_b_ref[...], eps)
    h1 = jnp.dot(xn2.astype(cdt), w1_ref[...],
                 preferred_element_type=jnp.float32) + b1_ref[...]
    h1 = jnp.maximum(h1, 0.0)                                 # relu, f32
    ff = jnp.dot(h1.astype(cdt), w2_ref[...],
                 preferred_element_type=jnp.float32) + b2_ref[...]

    # ---- residual 2 --------------------------------------------------------
    out_ref[0] = (ff + x2).astype(out_ref.dtype)


def _pack_params(params, mxu_dtype=jnp.bfloat16):
    """Fuse Q/K/V into one (D, 3D) weight (columns [Wq | Wk | Wv])."""
    wqkv = jnp.concatenate([params["wq"], params["wk"], params["wv"]], axis=1)
    bqkv = jnp.concatenate([params["bq"], params["bk"], params["bv"]], axis=1)
    return [
        params["ln1_g"], params["ln1_b"],
        wqkv.astype(mxu_dtype), bqkv.astype(jnp.float32),
        params["wo"].astype(mxu_dtype), params["bo"],
        params["ln2_g"], params["ln2_b"],
        params["w1"].astype(mxu_dtype), params["b1"],
        params["w2"].astype(mxu_dtype), params["b2"],
    ]


def transformer_encoder_block(xs, params, *, n_heads, layer_norm_eps=1e-12,
                              dropout_layer=0.0):
    """xs: [B, T, d_model] float32. Returns (xs_out, cache_input_san)."""
    B, T, D = xs.shape
    assert D % n_heads == 0
    dk = D // n_heads
    d_ff = params["w1"].shape[1]

    if dropout_layer > 0.0:
        # eval-mode LayerDrop rescaling (training sampling path not modeled)
        xs = xs / (1.0 - dropout_layer)

    weights = _pack_params(params)

    def full_spec(shape):
        return pl.BlockSpec(shape, lambda b: (0,) * len(shape))

    in_specs = [pl.BlockSpec((1, T, D), lambda b: (b, 0, 0))]
    in_specs += [full_spec(tuple(w.shape)) for w in weights]

    # VMEM budget: double-buffered weights + x/out/cache tiles, plus the
    # in-kernel activation intermediates, clamped to this generation's VMEM.
    weight_bytes = sum(int(w.size) * w.dtype.itemsize for w in weights)
    io_bytes = 2 * 3 * T * D * xs.dtype.itemsize
    act_bytes = (4 * T * 3 * D            # fused qkv (f32)
                 + 2 * 4 * n_heads * T * T  # scores + probs (f32)
                 + 2 * 4 * n_heads * T * dk  # ctx pre/post head re-pack (f32)
                 + 8 * 4 * T * D            # xn/residual/attn/x2/xn2/ff/casts
                 + 2 * 4 * T * d_ff)        # h1 (f32) + bf16 cast
    estimate = 2 * weight_bytes + io_bytes + act_bytes + (8 << 20)
    try:
        cap = int(pltpu.get_tpu_info().vmem_capacity_bytes)
    except Exception:
        cap = 128 << 20
    vmem_limit = int(min(max(estimate, 32 << 20), (cap * 7) // 8))

    kernel = functools.partial(_encoder_block_kernel,
                               n_heads=n_heads, eps=layer_norm_eps)

    out, cache = pl.pallas_call(
        kernel,
        out_shape=(jax.ShapeDtypeStruct((B, T, D), xs.dtype),
                   jax.ShapeDtypeStruct((B, T, D), xs.dtype)),
        grid_spec=pltpu.PrefetchScalarGridSpec(
            num_scalar_prefetch=0,
            grid=(B,),
            in_specs=in_specs,
            out_specs=[pl.BlockSpec((1, T, D), lambda b: (b, 0, 0)),
                       pl.BlockSpec((1, T, D), lambda b: (b, 0, 0))],
        ),
        compiler_params=pltpu.CompilerParams(
            dimension_semantics=("parallel",),
            vmem_limit_bytes=vmem_limit),
    )(xs, *weights)
    return out, cache


def _reference(xs, params, *, n_heads, eps=1e-12):
    """Pure-JAX f32 reference for correctness checking."""
    B, T, D = xs.shape
    dk = D // n_heads

    def ln(x, g, b):
        m = jnp.mean(x, axis=-1, keepdims=True)
        v = jnp.mean((x - m) ** 2, axis=-1, keepdims=True)
        return (x - m) * jax.lax.rsqrt(v + eps) * g + b

    residual = xs
    xn = ln(xs, params["ln1_g"][0], params["ln1_b"][0])
    q = xn @ params["wq"] + params["bq"][0]
    k = xn @ params["wk"] + params["bk"][0]
    v = xn @ params["wv"] + params["bv"][0]
    q = q.reshape(B, T, n_heads, dk) * (dk ** -0.5)
    k = k.reshape(B, T, n_heads, dk)
    v = v.reshape(B, T, n_heads, dk)
    s = jnp.einsum("bqhd,bkhd->bhqk", q, k)
    p = jax.nn.softmax(s, axis=-1)
    ctx = jnp.einsum("bhqk,bkhd->bqhd", p, v).reshape(B, T, D)
    attn = ctx @ params["wo"] + params["bo"][0]
    x2 = attn + residual
    xn2 = ln(x2, params["ln2_g"][0], params["ln2_b"][0])
    h = jnp.maximum(xn2 @ params["w1"] + params["b1"][0], 0.0)
    ff = h @ params["w2"] + params["b2"][0]
    return ff + x2, xn


def _init_params(key, d_model, d_ff):
    ks = jax.random.split(key, 8)
    s = 0.02
    return {
        "ln1_g": jnp.ones((1, d_model), jnp.float32),
        "ln1_b": jnp.zeros((1, d_model), jnp.float32),
        "wq": s * jax.random.normal(ks[0], (d_model, d_model), jnp.float32),
        "bq": jnp.zeros((1, d_model), jnp.float32),
        "wk": s * jax.random.normal(ks[1], (d_model, d_model), jnp.float32),
        "bk": jnp.zeros((1, d_model), jnp.float32),
        "wv": s * jax.random.normal(ks[2], (d_model, d_model), jnp.float32),
        "bv": jnp.zeros((1, d_model), jnp.float32),
        "wo": s * jax.random.normal(ks[3], (d_model, d_model), jnp.float32),
        "bo": jnp.zeros((1, d_model), jnp.float32),
        "ln2_g": jnp.ones((1, d_model), jnp.float32),
        "ln2_b": jnp.zeros((1, d_model), jnp.float32),
        "w1": s * jax.random.normal(ks[4], (d_model, d_ff), jnp.float32),
        "b1": 0.1 * jax.random.normal(ks[5], (1, d_ff), jnp.float32),
        "w2": s * jax.random.normal(ks[6], (d_ff, d_model), jnp.float32),
        "b2": 0.1 * jax.random.normal(ks[7], (1, d_model), jnp.float32),
    }


if __name__ == "__main__":
    B, T, d_model, d_ff, n_heads = 2, 8, 32, 64, 4
    key = jax.random.PRNGKey(0)
    k_x, k_p = jax.random.split(key)
    xs = jax.random.normal(k_x, (B, T, d_model), jnp.float32)
    params = _init_params(k_p, d_model, d_ff)

    out, cache = transformer_encoder_block(xs, params, n_heads=n_heads,
                                           layer_norm_eps=1e-12,
                                           dropout_layer=0.0)
    out = jax.block_until_ready(out)
    cache = jax.block_until_ready(cache)

    ref_out, ref_cache = _reference(xs, params, n_heads=n_heads)
    assert out.shape == (B, T, d_model)
    # bf16 MXU inputs + approximate reciprocal -> a few e-3 absolute error
    # against the pure-f32 reference; 2e-2 keeps a comfortable margin.
    assert jnp.allclose(out, ref_out, rtol=2e-2, atol=2e-2), "output mismatch"
    assert jnp.allclose(cache, ref_cache, rtol=2e-2, atol=2e-2), "cache mismatch"
    print("KERNEL_OK")
</pallas_src>

<mosaic_0001>
module attributes {stable_mosaic.version = 11 : i64} {
  func.func @_encoder_block_kernel(%arg0: i32, %arg1: memref<1x8x32xf32, #tpu.memory_space<vmem>>, %arg2: memref<1x32xf32, #tpu.memory_space<vmem>>, %arg3: memref<1x32xf32, #tpu.memory_space<vmem>>, %arg4: memref<32x96xbf16, #tpu.memory_space<vmem>>, %arg5: memref<1x96xf32, #tpu.memory_space<vmem>>, %arg6: memref<32x32xbf16, #tpu.memory_space<vmem>>, %arg7: memref<1x32xf32, #tpu.memory_space<vmem>>, %arg8: memref<1x32xf32, #tpu.memory_space<vmem>>, %arg9: memref<1x32xf32, #tpu.memory_space<vmem>>, %arg10: memref<32x64xbf16, #tpu.memory_space<vmem>>, %arg11: memref<1x64xf32, #tpu.memory_space<vmem>>, %arg12: memref<64x32xbf16, #tpu.memory_space<vmem>>, %arg13: memref<1x32xf32, #tpu.memory_space<vmem>>, %arg14: memref<1x8x32xf32, #tpu.memory_space<vmem>>, %arg15: memref<1x8x32xf32, #tpu.memory_space<vmem>>) attributes {dimension_semantics = [#tpu.dimension_semantics<parallel>], iteration_bounds = array<i64: 2>, scalar_prefetch = 0 : i64, scratch_operands = 0 : i64, tpu.core_type = #tpu.core_type<tc>, window_params = [{transform_indices = @transform_0, window_bounds = array<i64: 1, 8, 32>}, {pipeline_mode = #tpu.pipeline_mode<synchronous>, transform_indices = @transform_1, window_bounds = array<i64: 1, 32>}, {pipeline_mode = #tpu.pipeline_mode<synchronous>, transform_indices = @transform_2, window_bounds = array<i64: 1, 32>}, {pipeline_mode = #tpu.pipeline_mode<synchronous>, transform_indices = @transform_3, window_bounds = array<i64: 32, 96>}, {pipeline_mode = #tpu.pipeline_mode<synchronous>, transform_indices = @transform_4, window_bounds = array<i64: 1, 96>}, {pipeline_mode = #tpu.pipeline_mode<synchronous>, transform_indices = @transform_5, window_bounds = array<i64: 32, 32>}, {pipeline_mode = #tpu.pipeline_mode<synchronous>, transform_indices = @transform_6, window_bounds = array<i64: 1, 32>}, {pipeline_mode = #tpu.pipeline_mode<synchronous>, transform_indices = @transform_7, window_bounds = array<i64: 1, 32>}, {pipeline_mode = #tpu.pipeline_mode<synchronous>, transform_indices = @transform_8, window_bounds = array<i64: 1, 32>}, {pipeline_mode = #tpu.pipeline_mode<synchronous>, transform_indices = @transform_9, window_bounds = array<i64: 32, 64>}, {pipeline_mode = #tpu.pipeline_mode<synchronous>, transform_indices = @transform_10, window_bounds = array<i64: 1, 64>}, {pipeline_mode = #tpu.pipeline_mode<synchronous>, transform_indices = @transform_11, window_bounds = array<i64: 64, 32>}, {pipeline_mode = #tpu.pipeline_mode<synchronous>, transform_indices = @transform_12, window_bounds = array<i64: 1, 32>}, {transform_indices = @transform_13, window_bounds = array<i64: 1, 8, 32>}, {transform_indices = @transform_14, window_bounds = array<i64: 1, 8, 32>}]} {
    %c0 = arith.constant 0 : index
    %c0_0 = arith.constant 0 : index
    %c0_1 = arith.constant 0 : index
    %0 = vector.load %arg1[%c0, %c0_0, %c0_1] : memref<1x8x32xf32, #tpu.memory_space<vmem>>, vector<1x8x32xf32>
    %1 = vector.shape_cast %0 : vector<1x8x32xf32> to vector<8x32xf32>
    %c0_2 = arith.constant 0 : index
    %c0_3 = arith.constant 0 : index
    %2 = vector.load %arg2[%c0_2, %c0_3] : memref<1x32xf32, #tpu.memory_space<vmem>>, vector<1x32xf32>
    %c0_4 = arith.constant 0 : index
    %c0_5 = arith.constant 0 : index
    %3 = vector.load %arg3[%c0_4, %c0_5] : memref<1x32xf32, #tpu.memory_space<vmem>>, vector<1x32xf32>
    %cst = arith.constant dense<0.000000e+00> : vector<8xf32>
    %4 = vector.multi_reduction <add>, %1, %cst [1] : vector<8x32xf32> to vector<8xf32>
    %5 = vector.shape_cast %4 : vector<8xf32> to vector<8x1xf32>
    %cst_6 = arith.constant 3.200000e+01 : f32
    %6 = vector.broadcast %cst_6 : f32 to vector<8x1xf32>
    %7 = arith.divf %5, %6 : vector<8x1xf32>
    %8 = vector.broadcast %7 : vector<8x1xf32> to vector<8x32xf32>
    %9 = arith.subf %1, %8 : vector<8x32xf32>
    %10 = arith.mulf %9, %9 : vector<8x32xf32>
    %cst_7 = arith.constant dense<0.000000e+00> : vector<8xf32>
    %11 = vector.multi_reduction <add>, %10, %cst_7 [1] : vector<8x32xf32> to vector<8xf32>
    %12 = vector.shape_cast %11 : vector<8xf32> to vector<8x1xf32>
    %cst_8 = arith.constant 3.200000e+01 : f32
    %13 = vector.broadcast %cst_8 : f32 to vector<8x1xf32>
    %14 = arith.divf %12, %13 : vector<8x1xf32>
    %cst_9 = arith.constant 9.99999996E-13 : f32
    %15 = vector.broadcast %cst_9 : f32 to vector<8x1xf32>
    %16 = arith.addf %14, %15 : vector<8x1xf32>
    %17 = math.rsqrt %16 : vector<8x1xf32>
    %18 = vector.broadcast %17 : vector<8x1xf32> to vector<8x32xf32>
    %19 = arith.mulf %9, %18 : vector<8x32xf32>
    %20 = vector.broadcast %2 : vector<1x32xf32> to vector<8x32xf32>
    %21 = arith.mulf %19, %20 : vector<8x32xf32>
    %22 = vector.broadcast %3 : vector<1x32xf32> to vector<8x32xf32>
    %23 = arith.addf %21, %22 : vector<8x32xf32>
    %c0_10 = arith.constant 0 : index
    %c0_11 = arith.constant 0 : index
    %c0_12 = arith.constant 0 : index
    %24 = vector.load %arg15[%c0_10, %c0_11, %c0_12] : memref<1x8x32xf32, #tpu.memory_space<vmem>>, vector<1x8x32xf32>
    %25 = vector.shape_cast %24 : vector<1x8x32xf32> to vector<8x32xf32>
    %26 = vector.shape_cast %23 : vector<8x32xf32> to vector<1x8x32xf32>
    tpu.vector_store %arg15[%c0_10, %c0_11, %c0_12], %26 {strides = array<i32>} : memref<1x8x32xf32, #tpu.memory_space<vmem>>, vector<1x8x32xf32>,
    %27 = arith.truncf %23 : vector<8x32xf32> to vector<8x32xbf16>
    %c0_13 = arith.constant 0 : index
    %c0_14 = arith.constant 0 : index
    %28 = vector.load %arg4[%c0_13, %c0_14] : memref<32x96xbf16, #tpu.memory_space<vmem>>, vector<32x96xbf16>
    %cst_15 = arith.constant dense<0.000000e+00> : vector<8x96xf32>
    %29 = tpu.matmul %27, %28, %cst_15 {dimension_numbers = #tpu.dot_dimension_numbers<[1], [0], [0], [1], [0, 0, 1, 1], [], []>} : vector<8x32xbf16>, vector<32x96xbf16>, vector<8x96xf32> -> vector<8x96xf32>
    %c0_16 = arith.constant 0 : index
    %c0_17 = arith.constant 0 : index
    %30 = vector.load %arg5[%c0_16, %c0_17] : memref<1x96xf32, #tpu.memory_space<vmem>>, vector<1x96xf32>
    %31 = vector.broadcast %30 : vector<1x96xf32> to vector<8x96xf32>
    %32 = arith.addf %29, %31 : vector<8x96xf32>
    %33 = vector.extract_strided_slice %32 {offsets = [0, 0], sizes = [8, 32], strides = [1, 1]} : vector<8x96xf32> to vector<8x32xf32>
    %cst_18 = arith.constant 0.353553385 : f32
    %34 = vector.broadcast %cst_18 : f32 to vector<8x32xf32>
    %35 = arith.mulf %33, %34 : vector<8x32xf32>
    %36 = vector.extract_strided_slice %32 {offsets = [0, 32], sizes = [8, 32], strides = [1, 1]} : vector<8x96xf32> to vector<8x32xf32>
    %37 = vector.extract_strided_slice %32 {offsets = [0, 64], sizes = [8, 32], strides = [1, 1]} : vector<8x96xf32> to vector<8x32xf32>
    %38 = vector.shape_cast %35 : vector<8x32xf32> to vector<8x4x8xf32>
    %39 = tpu.transpose %38, [1, 0, 2] : vector<8x4x8xf32> -> vector<4x8x8xf32>
    %40 = vector.shape_cast %36 : vector<8x32xf32> to vector<8x4x8xf32>
    %41 = tpu.transpose %40, [1, 0, 2] : vector<8x4x8xf32> -> vector<4x8x8xf32>
    %42 = vector.shape_cast %37 : vector<8x32xf32> to vector<8x4x8xf32>
    %43 = tpu.transpose %42, [1, 0, 2] : vector<8x4x8xf32> -> vector<4x8x8xf32>
    %44 = arith.truncf %39 : vector<4x8x8xf32> to vector<4x8x8xbf16>
    %45 = arith.truncf %41 : vector<4x8x8xf32> to vector<4x8x8xbf16>
    "tpu.trace_start"() <{level = 10 : i32, message = "hqd,hkd->hqk"}> : () -> ()
    %cst_19 = arith.constant dense<0.000000e+00> : vector<4x8x8xf32>
    %46 = tpu.matmul %44, %45, %cst_19 {dimension_numbers = #tpu.dot_dimension_numbers<[2], [2], [1], [1], [0, 0, 0, 1, 1, 1], [0], [0]>} : vector<4x8x8xbf16>, vector<4x8x8xbf16>, vector<4x8x8xf32> -> vector<4x8x8xf32>
    "tpu.trace_stop"() : () -> ()
    %cst_20 = arith.constant dense<0xFF800000> : vector<4x8xf32>
    %47 = vector.multi_reduction <maximumf>, %46, %cst_20 [2] : vector<4x8x8xf32> to vector<4x8xf32>
    %48 = vector.shape_cast %47 : vector<4x8xf32> to vector<4x8x1xf32>
    %49 = vector.broadcast %48 : vector<4x8x1xf32> to vector<4x8x8xf32>
    %50 = arith.subf %46, %49 : vector<4x8x8xf32>
    %51 = math.exp %50 : vector<4x8x8xf32>
    %cst_21 = arith.constant dense<0.000000e+00> : vector<4x8xf32>
    %52 = vector.multi_reduction <add>, %51, %cst_21 [2] : vector<4x8x8xf32> to vector<4x8xf32>
    %53 = vector.shape_cast %52 : vector<4x8xf32> to vector<4x8x1xf32>
    %54 = tpu.reciprocal %53 {approx = true} : vector<4x8x1xf32> -> vector<4x8x1xf32>
    %55 = vector.broadcast %54 : vector<4x8x1xf32> to vector<4x8x8xf32>
    %56 = arith.mulf %51, %55 : vector<4x8x8xf32>
    %57 = arith.truncf %56 : vector<4x8x8xf32> to vector<4x8x8xbf16>
    %58 = arith.truncf %43 : vector<4x8x8xf32> to vector<4x8x8xbf16>
    "tpu.trace_start"() <{level = 10 : i32, message = "hqk,hkd->hqd"}> : () -> ()
    %cst_22 = arith.constant dense<0.000000e+00> : vector<4x8x8xf32>
    %59 = tpu.matmul %57, %58, %cst_22 {dimension_numbers = #tpu.dot_dimension_numbers<[2], [1], [1], [2], [0, 0, 0, 1, 1, 2], [0], [0]>} : vector<4x8x8xbf16>, vector<4x8x8xbf16>, vector<4x8x8xf32> -> vector<4x8x8xf32>
    "tpu.trace_stop"() : () -> ()
    %60 = tpu.transpose %59, [1, 0, 2] : vector<4x8x8xf32> -> vector<8x4x8xf32>
    %61 = vector.shape_cast %60 : vector<8x4x8xf32> to vector<8x32xf32>
    %62 = arith.truncf %61 : vector<8x32xf32> to vector<8x32xbf16>
    %c0_23 = arith.constant 0 : index
    %c0_24 = arith.constant 0 : index
    %63 = vector.load %arg6[%c0_23, %c0_24] : memref<32x32xbf16, #tpu.memory_space<vmem>>, vector<32x32xbf16>
    %cst_25 = arith.constant dense<0.000000e+00> : vector<8x32xf32>
    %64 = tpu.matmul %62, %63, %cst_25 {dimension_numbers = #tpu.dot_dimension_numbers<[1], [0], [0], [1], [0, 0, 1, 1], [], []>} : vector<8x32xbf16>, vector<32x32xbf16>, vector<8x32xf32> -> vector<8x32xf32>
    %c0_26 = arith.constant 0 : index
    %c0_27 = arith.constant 0 : index
    %65 = vector.load %arg7[%c0_26, %c0_27] : memref<1x32xf32, #tpu.memory_space<vmem>>, vector<1x32xf32>
    %66 = vector.broadcast %65 : vector<1x32xf32> to vector<8x32xf32>
    %67 = arith.addf %64, %66 : vector<8x32xf32>
    %68 = arith.addf %67, %1 : vector<8x32xf32>
    %c0_28 = arith.constant 0 : index
    %c0_29 = arith.constant 0 : index
    %69 = vector.load %arg8[%c0_28, %c0_29] : memref<1x32xf32, #tpu.memory_space<vmem>>, vector<1x32xf32>
    %c0_30 = arith.constant 0 : index
    %c0_31 = arith.constant 0 : index
    %70 = vector.load %arg9[%c0_30, %c0_31] : memref<1x32xf32, #tpu.memory_space<vmem>>, vector<1x32xf32>
    %cst_32 = arith.constant dense<0.000000e+00> : vector<8xf32>
    %71 = vector.multi_reduction <add>, %68, %cst_32 [1] : vector<8x32xf32> to vector<8xf32>
    %72 = vector.shape_cast %71 : vector<8xf32> to vector<8x1xf32>
    %cst_33 = arith.constant 3.200000e+01 : f32
    %73 = vector.broadcast %cst_33 : f32 to vector<8x1xf32>
    %74 = arith.divf %72, %73 : vector<8x1xf32>
    %75 = vector.broadcast %74 : vector<8x1xf32> to vector<8x32xf32>
    %76 = arith.subf %68, %75 : vector<8x32xf32>
    %77 = arith.mulf %76, %76 : vector<8x32xf32>
    %cst_34 = arith.constant dense<0.000000e+00> : vector<8xf32>
    %78 = vector.multi_reduction <add>, %77, %cst_34 [1] : vector<8x32xf32> to vector<8xf32>
    %79 = vector.shape_cast %78 : vector<8xf32> to vector<8x1xf32>
    %cst_35 = arith.constant 3.200000e+01 : f32
    %80 = vector.broadcast %cst_35 : f32 to vector<8x1xf32>
    %81 = arith.divf %79, %80 : vector<8x1xf32>
    %cst_36 = arith.constant 9.99999996E-13 : f32
    %82 = vector.broadcast %cst_36 : f32 to vector<8x1xf32>
    %83 = arith.addf %81, %82 : vector<8x1xf32>
    %84 = math.rsqrt %83 : vector<8x1xf32>
    %85 = vector.broadcast %84 : vector<8x1xf32> to vector<8x32xf32>
    %86 = arith.mulf %76, %85 : vector<8x32xf32>
    %87 = vector.broadcast %69 : vector<1x32xf32> to vector<8x32xf32>
    %88 = arith.mulf %86, %87 : vector<8x32xf32>
    %89 = vector.broadcast %70 : vector<1x32xf32> to vector<8x32xf32>
    %90 = arith.addf %88, %89 : vector<8x32xf32>
    %91 = arith.truncf %90 : vector<8x32xf32> to vector<8x32xbf16>
    %c0_37 = arith.constant 0 : index
    %c0_38 = arith.constant 0 : index
    %92 = vector.load %arg10[%c0_37, %c0_38] : memref<32x64xbf16, #tpu.memory_space<vmem>>, vector<32x64xbf16>
    %cst_39 = arith.constant dense<0.000000e+00> : vector<8x64xf32>
    %93 = tpu.matmul %91, %92, %cst_39 {dimension_numbers = #tpu.dot_dimension_numbers<[1], [0], [0], [1], [0, 0, 1, 1], [], []>} : vector<8x32xbf16>, vector<32x64xbf16>, vector<8x64xf32> -> vector<8x64xf32>
    %c0_40 = arith.constant 0 : index
    %c0_41 = arith.constant 0 : index
    %94 = vector.load %arg11[%c0_40, %c0_41] : memref<1x64xf32, #tpu.memory_space<vmem>>, vector<1x64xf32>
    %95 = vector.broadcast %94 : vector<1x64xf32> to vector<8x64xf32>
    %96 = arith.addf %93, %95 : vector<8x64xf32>
    %cst_42 = arith.constant 0.000000e+00 : f32
    %97 = vector.broadcast %cst_42 : f32 to vector<8x64xf32>
    %98 = arith.maximumf %96, %97 : vector<8x64xf32>
    %99 = arith.truncf %98 : vector<8x64xf32> to vector<8x64xbf16>
    %c0_43 = arith.constant 0 : index
    %c0_44 = arith.constant 0 : index
    %100 = vector.load %arg12[%c0_43, %c0_44] : memref<64x32xbf16, #tpu.memory_space<vmem>>, vector<64x32xbf16>
    %cst_45 = arith.constant dense<0.000000e+00> : vector<8x32xf32>
    %101 = tpu.matmul %99, %100, %cst_45 {dimension_numbers = #tpu.dot_dimension_numbers<[1], [0], [0], [1], [0, 0, 1, 1], [], []>} : vector<8x64xbf16>, vector<64x32xbf16>, vector<8x32xf32> -> vector<8x32xf32>
    %c0_46 = arith.constant 0 : index
    %c0_47 = arith.constant 0 : index
    %102 = vector.load %arg13[%c0_46, %c0_47] : memref<1x32xf32, #tpu.memory_space<vmem>>, vector<1x32xf32>
    %103 = vector.broadcast %102 : vector<1x32xf32> to vector<8x32xf32>
    %104 = arith.addf %101, %103 : vector<8x32xf32>
    %105 = arith.addf %104, %68 : vector<8x32xf32>
    %c0_48 = arith.constant 0 : index
    %c0_49 = arith.constant 0 : index
    %c0_50 = arith.constant 0 : index
    %106 = vector.load %arg14[%c0_48, %c0_49, %c0_50] : memref<1x8x32xf32, #tpu.memory_space<vmem>>, vector<1x8x32xf32>
    %107 = vector.shape_cast %106 : vector<1x8x32xf32> to vector<8x32xf32>
    %108 = vector.shape_cast %105 : vector<8x32xf32> to vector<1x8x32xf32>
    tpu.vector_store %arg14[%c0_48, %c0_49, %c0_50], %108 {strides = array<i32>} : memref<1x8x32xf32, #tpu.memory_space<vmem>>, vector<1x8x32xf32>,
    return
  }
  func.func @transform_0(%arg0: i32) -> (i32, i32, i32) {
    %c0_i32 = arith.constant 0 : i32
    %c0_i32_0 = arith.constant 0 : i32
    %c0_i32_1 = arith.constant 0 : i32
    return %arg0, %c0_i32, %c0_i32_0 : i32, i32, i32
  }
  func.func @transform_1(%arg0: i32) -> (i32, i32) {
    %c0_i32 = arith.constant 0 : i32
    %c0_i32_0 = arith.constant 0 : i32
    %c0_i32_1 = arith.constant 0 : i32
    return %c0_i32, %c0_i32_0 : i32, i32
  }
  func.func @transform_2(%arg0: i32) -> (i32, i32) {
    %c0_i32 = arith.constant 0 : i32
    %c0_i32_0 = arith.constant 0 : i32
    %c0_i32_1 = arith.constant 0 : i32
    return %c0_i32, %c0_i32_0 : i32, i32
  }
  func.func @transform_3(%arg0: i32) -> (i32, i32) {
    %c0_i32 = arith.constant 0 : i32
    %c0_i32_0 = arith.constant 0 : i32
    %c0_i32_1 = arith.constant 0 : i32
    return %c0_i32, %c0_i32_0 : i32, i32
  }
  func.func @transform_4(%arg0: i32) -> (i32, i32) {
    %c0_i32 = arith.constant 0 : i32
    %c0_i32_0 = arith.constant 0 : i32
    %c0_i32_1 = arith.constant 0 : i32
    return %c0_i32, %c0_i32_0 : i32, i32
  }
  func.func @transform_5(%arg0: i32) -> (i32, i32) {
    %c0_i32 = arith.constant 0 : i32
    %c0_i32_0 = arith.constant 0 : i32
    %c0_i32_1 = arith.constant 0 : i32
    return %c0_i32, %c0_i32_0 : i32, i32
  }
  func.func @transform_6(%arg0: i32) -> (i32, i32) {
    %c0_i32 = arith.constant 0 : i32
    %c0_i32_0 = arith.constant 0 : i32
    %c0_i32_1 = arith.constant 0 : i32
    return %c0_i32, %c0_i32_0 : i32, i32
  }
  func.func @transform_7(%arg0: i32) -> (i32, i32) {
    %c0_i32 = arith.constant 0 : i32
    %c0_i32_0 = arith.constant 0 : i32
    %c0_i32_1 = arith.constant 0 : i32
    return %c0_i32, %c0_i32_0 : i32, i32
  }
  func.func @transform_8(%arg0: i32) -> (i32, i32) {
    %c0_i32 = arith.constant 0 : i32
    %c0_i32_0 = arith.constant 0 : i32
    %c0_i32_1 = arith.constant 0 : i32
    return %c0_i32, %c0_i32_0 : i32, i32
  }
  func.func @transform_9(%arg0: i32) -> (i32, i32) {
    %c0_i32 = arith.constant 0 : i32
    %c0_i32_0 = arith.constant 0 : i32
    %c0_i32_1 = arith.constant 0 : i32
    return %c0_i32, %c0_i32_0 : i32, i32
  }
  func.func @transform_10(%arg0: i32) -> (i32, i32) {
    %c0_i32 = arith.constant 0 : i32
    %c0_i32_0 = arith.constant 0 : i32
    %c0_i32_1 = arith.constant 0 : i32
    return %c0_i32, %c0_i32_0 : i32, i32
  }
  func.func @transform_11(%arg0: i32) -> (i32, i32) {
    %c0_i32 = arith.constant 0 : i32
    %c0_i32_0 = arith.constant 0 : i32
    %c0_i32_1 = arith.constant 0 : i32
    return %c0_i32, %c0_i32_0 : i32, i32
  }
  func.func @transform_12(%arg0: i32) -> (i32, i32) {
    %c0_i32 = arith.constant 0 : i32
    %c0_i32_0 = arith.constant 0 : i32
    %c0_i32_1 = arith.constant 0 : i32
    return %c0_i32, %c0_i32_0 : i32, i32
  }
  func.func @transform_13(%arg0: i32) -> (i32, i32, i32) {
    %c0_i32 = arith.constant 0 : i32
    %c0_i32_0 = arith.constant 0 : i32
    %c0_i32_1 = arith.constant 0 : i32
    return %arg0, %c0_i32, %c0_i32_0 : i32, i32, i32
  }
  func.func @transform_14(%arg0: i32) -> (i32, i32, i32) {
    %c0_i32 = arith.constant 0 : i32
    %c0_i32_0 = arith.constant 0 : i32
    %c0_i32_1 = arith.constant 0 : i32
    return %arg0, %c0_i32, %c0_i32_0 : i32, i32, i32
  }
}

</mosaic_0001>

<llo_original>
// kernel: tpu_custom_call.1
$region0: #{tpu_custom_call.1}
  #allocation0 [shape = 'u32[]', space=smem, size = 0x4, offset = 0x4, fixed_abs, tag = 'smem constant byte address 0x4 - core index']
  #allocation1 [shape = 'u32[144,128]{1,0:T(1,128)}', space=vmem, size = 0x12000, scoped, tag = 'internal scratch']
  %s0 = inlined_call_operand.vmem [shape: f32[2,8,32], index: 0, kind: input, shape index: {}]
  %s1 = inlined_call_operand.hbm [shape: f32[1,32], index: 1, kind: input, shape index: {}]
  %s2 = inlined_call_operand.hbm [shape: f32[1,32], index: 2, kind: input, shape index: {}]
  %s3 = inlined_call_operand.vmem [shape: bf16[32,96], index: 3, kind: input, shape index: {}]
  %s4 = inlined_call_operand.hbm [shape: f32[1,96], index: 4, kind: input, shape index: {}]
  %s5 = inlined_call_operand.vmem [shape: bf16[32,32], index: 5, kind: input, shape index: {}]
  %s6 = inlined_call_operand.hbm [shape: f32[1,32], index: 6, kind: input, shape index: {}]
  %s7 = inlined_call_operand.hbm [shape: f32[1,32], index: 7, kind: input, shape index: {}]
  %s8 = inlined_call_operand.hbm [shape: f32[1,32], index: 8, kind: input, shape index: {}]
  %s9 = inlined_call_operand.vmem [shape: bf16[32,64], index: 9, kind: input, shape index: {}]
  %s10 = inlined_call_operand.vmem [shape: f32[1,64], index: 10, kind: input, shape index: {}]
  %s11 = inlined_call_operand.vmem [shape: bf16[64,32], index: 11, kind: input, shape index: {}]
  %s12 = inlined_call_operand.vmem [shape: f32[1,32], index: 12, kind: input, shape index: {}]
  %s13 = inlined_call_operand.hbm [shape: f32[2,8,32], index: 13, kind: output, shape index: {0}]
  %s14 = inlined_call_operand.hbm [shape: f32[2,8,32], index: 14, kind: output, shape index: {1}]
  %15 = xla_tuple %s13, %s14
  %s16 = sld [smem:[#allocation0]]
  $region117: #{tpu_custom_call.1} parent=0
    _
  %s18 = ssub.s32 1, %s16
  %s19 = scalar_select 0, %s18, %s16
  $region1: #{tpu_custom_call.1} parent=0
    #allocation2 [shape = 'u8[512]{0}', space=vmem, size = 0x400, scoped, tag = 'input window, operand 1, single buffered']
    #allocation3 [shape = 's32[2]{0}', space=sflag, size = 0x8, scoped, tag = 'scoped memory for tpu_custom_call.1']
    #allocation4 [shape = 's32[2]{0}', space=sflag, size = 0x8, scoped, tag = 'scoped memory for tpu_custom_call.1']
    #allocation5 [shape = 'u8[512]{0}', space=vmem, size = 0x400, scoped, tag = 'input window, operand 2, single buffered']
    #allocation6 [shape = 's32[1]{0}', space=sflag, size = 0x4, scoped, tag = 'scoped memory for tpu_custom_call.1']
    #allocation7 [shape = 'u8[512]{0}', space=vmem, size = 0x400, scoped, tag = 'input window, operand 4, single buffered']
    #allocation8 [shape = 'u8[512]{0}', space=vmem, size = 0x400, scoped, tag = 'input window, operand 6, single buffered']
    #allocation9 [shape = 's32[1]{0}', space=sflag, size = 0x4, scoped, tag = 'scoped memory for tpu_custom_call.1']
    #allocation10 [shape = 'u8[512]{0}', space=vmem, size = 0x400, scoped, tag = 'input window, operand 7, single buffered']
    #allocation11 [shape = 'u8[512]{0}', space=vmem, size = 0x400, scoped, tag = 'input window, operand 8, single buffered']
    #allocation12 [shape = 's32[1]{0}', space=sflag, size = 0x4, scoped, tag = 'scoped memory for tpu_custom_call.1']
    #allocation13 [shape = 'u8[8192]{0}', space=vmem, size = 0x2000, scoped, tag = 'output window, operand 0']
    #allocation14 [shape = 'u8[8192]{0}', space=vmem, size = 0x2000, scoped, tag = 'output window, operand 1']
    #allocation15 [shape = 's32[2]{0}', space=sflag, size = 0x8, scoped, tag = 'scoped memory for tpu_custom_call.1']
    %20 = vsyncpa [#allocation3], 0
    %21 = vsyncpa [#allocation6], 0
    %22 = vsyncpa [#allocation9], 0
    %23 = vsyncpa [#allocation12], 0
    %24 = vsyncpa [#allocation4], 0
    %s25 = scalar_lea.sflag [#allocation4], 1
    %26 = vsyncpa %s25, 0
    %27 = vsyncpa [#allocation15], 0
    %s28 = scalar_lea.sflag [#allocation15], 1
    %29 = vsyncpa %s28, 0
    loop: start=0, step=1, limit=4
    $region2: #{tpu_custom_call.1} parent=1 // loop_pre_header
      _
    $region3: #{tpu_custom_call.1} parent=1 // loop_header
      %s31 = sphi 0, %s35
      %p32 = scmp.ge.s32.totalorder %s31, 4
      %s41 = sphi 0, %s43
      %s44 = sphi 0, %s41
      %s45 = sphi 0, %s44
      %s61 = sphi 0, %s45
      %s65 = sphi 0, %s65
      %s67 = sphi 0, %s65
      %s68 = sphi 0, %s67
      %s82 = sphi 0, %s68
      %s86 = sphi 0, %s86
      %s88 = sphi 0, %s86
      %s89 = sphi 0, %s88
      %s103 = sphi 0, %s89
      %s107 = sphi 0, %s107
      %s109 = sphi 0, %s107
      %s110 = sphi 0, %s109
      %s124 = sphi 0, %s110
      %s128 = sphi 0, %s128
      %s130 = sphi 0, %s128
      %s131 = sphi 0, %s130
      %s145 = sphi 0, %s131
      %s149 = sphi 0, %s149
      %s151 = sphi 0, %s149
      %s152 = sphi 0, %s151
      %s166 = sphi 0, %s152
      %s170 = sphi 0, %s170
      %s172 = sphi 0, %s170
      %s173 = sphi 0, %s172
      %s187 = sphi 0, %s173
      %s191 = sphi 0, %s191
      %s193 = sphi 0, %s191
      %s194 = sphi 0, %s193
      %s208 = sphi 0, %s194
      %s212 = sphi 0, %s212
      %s214 = sphi 0, %s212
      %s215 = sphi 0, %s214
      %s229 = sphi 0, %s215
      %s233 = sphi 0, %s233
      %s235 = sphi 0, %s233
      %s236 = sphi 0, %s235
      %s250 = sphi 0, %s236
      %s254 = sphi 0, %s254
      %s256 = sphi 0, %s254
      %s257 = sphi 0, %s256
      %s271 = sphi 0, %s257
      %s275 = sphi 0, %s275
      %s277 = sphi 0, %s275
      %s278 = sphi 0, %s277
      %s292 = sphi 0, %s278
      %s296 = sphi 0, %s296
      %s298 = sphi 0, %s296
      %s299 = sphi 0, %s298
      %s313 = sphi 0, %s299
      %s319 = sphi 0, %s321
      %s322 = sphi 0, %s319
      %s323 = sphi 0, %s322
      %s339 = sphi 0, %s323
      %s345 = sphi 0, %s347
      %s348 = sphi 0, %s345
      %s349 = sphi 0, %s348
      %s365 = sphi 0, %s349
    $region4: #{tpu_custom_call.1} parent=1 // loop_header_branch
      %34 = sbr.rel (%p32) target = $region8
    $region5: #{tpu_custom_call.1} parent=1 // loop_body
      %s36 = ssub.s32 %s31, 1
      %s37 = ssub.s32 %s31, 2
      %s38 = sadd.s32 %s31, 1
      %s39 = ssub.s32 %s31, %s38
      %p40 = scmp.eq.s32.totalorder %s39, 0
      %s42 = sadd.s32 %s41, 1
      %s43 = scalar_select %p40, %s41, %s42
      %p46 = pneg %p40
      %p47 = scmp.eq.s32.totalorder %s31, 1
      %p48 = por %p46, %p47
      %p49 = scmp.ne.s32.totalorder %s41, %s44
      %p50 = scmp.eq.s32.totalorder %s31, 0
      %p51 = por %p49, %p50
      %p52 = scmp.ne.s32.totalorder %s41, %s44
      %p53 = scmp.eq.s32.totalorder %s36, 1
      %p54 = por %p52, %p53
      %p55 = scmp.ne.s32.totalorder %s44, %s45
      %p56 = scmp.eq.s32.totalorder %s36, 0
      %p57 = por %p55, %p56
      %p58 = scmp.ne.s32.totalorder %s44, %s45
      %p59 = scmp.eq.s32.totalorder %s37, 1
      %p60 = por %p58, %p59
      %p62 = scmp.ne.s32.totalorder %s45, %s61
      %p63 = scmp.eq.s32.totalorder %s37, 0
      %p64 = por %p62, %p63
      %s66 = sadd.s32 %s65, 1
      %p69 = scmp.eq.s32.totalorder %s31, 1
      %p70 = scmp.ne.s32.totalorder %s65, %s67
      %p71 = scmp.eq.s32.totalorder %s31, 0
      %p72 = por %p70, %p71
      %p73 = scmp.ne.s32.totalorder %s65, %s67
      %p74 = scmp.eq.s32.totalorder %s36, 1
      %p75 = por %p73, %p74
      %p76 = scmp.ne.s32.totalorder %s67, %s68
      %p77 = scmp.eq.s32.totalorder %s36, 0
      %p78 = por %p76, %p77
      %p79 = scmp.ne.s32.totalorder %s67, %s68
      %p80 = scmp.eq.s32.totalorder %s37, 1
      %p81 = por %p79, %p80
      %p83 = scmp.ne.s32.totalorder %s68, %s82
      %p84 = scmp.eq.s32.totalorder %s37, 0
      %p85 = por %p83, %p84
      %s87 = sadd.s32 %s86, 1
      %p90 = scmp.eq.s32.totalorder %s31, 1
      %p91 = scmp.ne.s32.totalorder %s86, %s88
      %p92 = scmp.eq.s32.totalorder %s31, 0
      %p93 = por %p91, %p92
      %p94 = scmp.ne.s32.totalorder %s86, %s88
      %p95 = scmp.eq.s32.totalorder %s36, 1
      %p96 = por %p94, %p95
      %p97 = scmp.ne.s32.totalorder %s88, %s89
      %p98 = scmp.eq.s32.totalorder %s36, 0
      %p99 = por %p97, %p98
      %p100 = scmp.ne.s32.totalorder %s88, %s89
      %p101 = scmp.eq.s32.totalorder %s37, 1
      %p102 = por %p100, %p101
      %p104 = scmp.ne.s32.totalorder %s89, %s103
      %p105 = scmp.eq.s32.totalorder %s37, 0
      %p106 = por %p104, %p105
      %s108 = sadd.s32 %s107, 1
      %p111 = scmp.eq.s32.totalorder %s31, 1
      %p112 = scmp.ne.s32.totalorder %s107, %s109
      %p113 = scmp.eq.s32.totalorder %s31, 0
      %p114 = por %p112, %p113
      %p115 = scmp.ne.s32.totalorder %s107, %s109
      %p116 = scmp.eq.s32.totalorder %s36, 1
      %p117 = por %p115, %p116
      %p118 = scmp.ne.s32.totalorder %s109, %s110
      %p119 = scmp.eq.s32.totalorder %s36, 0
      %p120 = por %p118, %p119
      %p121 = scmp.ne.s32.totalorder %s109, %s110
      %p122 = scmp.eq.s32.totalorder %s37, 1
      %p123 = por %p121, %p122
      %p125 = scmp.ne.s32.totalorder %s110, %s124
      %p126 = scmp.eq.s32.totalorder %s37, 0
      %p127 = por %p125, %p126
      %s129 = sadd.s32 %s128, 1
      %p132 = scmp.eq.s32.totalorder %s31, 1
      %p133 = scmp.ne.s32.totalorder %s128, %s130
      %p134 = scmp.eq.s32.totalorder %s31, 0
      %p135 = por %p133, %p134
      %p136 = scmp.ne.s32.totalorder %s128, %s130
      %p137 = scmp.eq.s32.totalorder %s36, 1
      %p138 = por %p136, %p137
      %p139 = scmp.ne.s32.totalorder %s130, %s131
      %p140 = scmp.eq.s32.totalorder %s36, 0
      %p141 = por %p139, %p140
      %p142 = scmp.ne.s32.totalorder %s130, %s131
      %p143 = scmp.eq.s32.totalorder %s37, 1
      %p144 = por %p142, %p143
      %p146 = scmp.ne.s32.totalorder %s131, %s145
      %p147 = scmp.eq.s32.totalorder %s37, 0
      %p148 = por %p146, %p147
      %s150 = sadd.s32 %s149, 1
      %p153 = scmp.eq.s32.totalorder %s31, 1
      %p154 = scmp.ne.s32.totalorder %s149, %s151
      %p155 = scmp.eq.s32.totalorder %s31, 0
      %p156 = por %p154, %p155
      %p157 = scmp.ne.s32.totalorder %s149, %s151
      %p158 = scmp.eq.s32.totalorder %s36, 1
      %p159 = por %p157, %p158
      %p160 = scmp.ne.s32.totalorder %s151, %s152
      %p161 = scmp.eq.s32.totalorder %s36, 0
      %p162 = por %p160, %p161
      %p163 = scmp.ne.s32.totalorder %s151, %s152
      %p164 = scmp.eq.s32.totalorder %s37, 1
      %p165 = por %p163, %p164
      %p167 = scmp.ne.s32.totalorder %s152, %s166
      %p168 = scmp.eq.s32.totalorder %s37, 0
      %p169 = por %p167, %p168
      %s171 = sadd.s32 %s170, 1
      %p174 = scmp.eq.s32.totalorder %s31, 1
      %p175 = scmp.ne.s32.totalorder %s170, %s172
      %p176 = scmp.eq.s32.totalorder %s31, 0
      %p177 = por %p175, %p176
      %p178 = scmp.ne.s32.totalorder %s170, %s172
      %p179 = scmp.eq.s32.totalorder %s36, 1
      %p180 = por %p178, %p179
      %p181 = scmp.ne.s32.totalorder %s172, %s173
      %p182 = scmp.eq.s32.totalorder %s36, 0
      %p183 = por %p181, %p182
      %p184 = scmp.ne.s32.totalorder %s172, %s173
      %p185 = scmp.eq.s32.totalorder %s37, 1
      %p186 = por %p184, %p185
      %p188 = scmp.ne.s32.totalorder %s173, %s187
      %p189 = scmp.eq.s32.totalorder %s37, 0
      %p190 = por %p188, %p189
      %s192 = sadd.s32 %s191, 1
      %p195 = scmp.eq.s32.totalorder %s31, 1
      %p196 = scmp.ne.s32.totalorder %s191, %s193
      %p197 = scmp.eq.s32.totalorder %s31, 0
      %p198 = por %p196, %p197
      %p199 = scmp.ne.s32.totalorder %s191, %s193
      %p200 = scmp.eq.s32.totalorder %s36, 1
      %p201 = por %p199, %p200
      %p202 = scmp.ne.s32.totalorder %s193, %s194
      %p203 = scmp.eq.s32.totalorder %s36, 0
      %p204 = por %p202, %p203
      %p205 = scmp.ne.s32.totalorder %s193, %s194
      %p206 = scmp.eq.s32.totalorder %s37, 1
      %p207 = por %p205, %p206
      %p209 = scmp.ne.s32.totalorder %s194, %s208
      %p210 = scmp.eq.s32.totalorder %s37, 0
      %p211 = por %p209, %p210
      %s213 = sadd.s32 %s212, 1
      %p216 = scmp.eq.s32.totalorder %s31, 1
      %p217 = scmp.ne.s32.totalorder %s212, %s214
      %p218 = scmp.eq.s32.totalorder %s31, 0
      %p219 = por %p217, %p218
      %p220 = scmp.ne.s32.totalorder %s212, %s214
      %p221 = scmp.eq.s32.totalorder %s36, 1
      %p222 = por %p220, %p221
      %p223 = scmp.ne.s32.totalorder %s214, %s215
      %p224 = scmp.eq.s32.totalorder %s36, 0
      %p225 = por %p223, %p224
      %p226 = scmp.ne.s32.totalorder %s214, %s215
      %p227 = scmp.eq.s32.totalorder %s37, 1
      %p228 = por %p226, %p227
      %p230 = scmp.ne.s32.totalorder %s215, %s229
      %p231 = scmp.eq.s32.totalorder %s37, 0
      %p232 = por %p230, %p231
      %s234 = sadd.s32 %s233, 1
      %p237 = scmp.eq.s32.totalorder %s31, 1
      %p238 = scmp.ne.s32.totalorder %s233, %s235
      %p239 = scmp.eq.s32.totalorder %s31, 0
      %p240 = por %p238, %p239
      %p241 = scmp.ne.s32.totalorder %s233, %s235
      %p242 = scmp.eq.s32.totalorder %s36, 1
      %p243 = por %p241, %p242
      %p244 = scmp.ne.s32.totalorder %s235, %s236
      %p245 = scmp.eq.s32.totalorder %s36, 0
      %p246 = por %p244, %p245
      %p247 = scmp.ne.s32.totalorder %s235, %s236
      %p248 = scmp.eq.s32.totalorder %s37, 1
      %p249 = por %p247, %p248
      %p251 = scmp.ne.s32.totalorder %s236, %s250
      %p252 = scmp.eq.s32.totalorder %s37, 0
      %p253 = por %p251, %p252
      %s255 = sadd.s32 %s254, 1
      %p258 = scmp.eq.s32.totalorder %s31, 1
      %p259 = scmp.ne.s32.totalorder %s254, %s256
      %p260 = scmp.eq.s32.totalorder %s31, 0
      %p261 = por %p259, %p260
      %p262 = scmp.ne.s32.totalorder %s254, %s256
      %p263 = scmp.eq.s32.totalorder %s36, 1
      %p264 = por %p262, %p263
      %p265 = scmp.ne.s32.totalorder %s256, %s257
      %p266 = scmp.eq.s32.totalorder %s36, 0
      %p267 = por %p265, %p266
      %p268 = scmp.ne.s32.totalorder %s256, %s257
      %p269 = scmp.eq.s32.totalorder %s37, 1
      %p270 = por %p268, %p269
      %p272 = scmp.ne.s32.totalorder %s257, %s271
      %p273 = scmp.eq.s32.totalorder %s37, 0
      %p274 = por %p272, %p273
      %s276 = sadd.s32 %s275, 1
      %p279 = scmp.eq.s32.totalorder %s31, 1
      %p280 = scmp.ne.s32.totalorder %s275, %s277
      %p281 = scmp.eq.s32.totalorder %s31, 0
      %p282 = por %p280, %p281
      %p283 = scmp.ne.s32.totalorder %s275, %s277
      %p284 = scmp.eq.s32.totalorder %s36, 1
      %p285 = por %p283, %p284
      %p286 = scmp.ne.s32.totalorder %s277, %s278
      %p287 = scmp.eq.s32.totalorder %s36, 0
      %p288 = por %p286, %p287
      %p289 = scmp.ne.s32.totalorder %s277, %s278
      %p290 = scmp.eq.s32.totalorder %s37, 1
      %p291 = por %p289, %p290
      %p293 = scmp.ne.s32.totalorder %s278, %s292
      %p294 = scmp.eq.s32.totalorder %s37, 0
      %p295 = por %p293, %p294
      %s297 = sadd.s32 %s296, 1
      %p300 = scmp.eq.s32.totalorder %s31, 1
      %p301 = scmp.ne.s32.totalorder %s296, %s298
      %p302 = scmp.eq.s32.totalorder %s31, 0
      %p303 = por %p301, %p302
      %p304 = scmp.ne.s32.totalorder %s296, %s298
      %p305 = scmp.eq.s32.totalorder %s36, 1
      %p306 = por %p304, %p305
      %p307 = scmp.ne.s32.totalorder %s298, %s299
      %p308 = scmp.eq.s32.totalorder %s36, 0
      %p309 = por %p307, %p308
      %p310 = scmp.ne.s32.totalorder %s298, %s299
      %p311 = scmp.eq.s32.totalorder %s37, 1
      %p312 = por %p310, %p311
      %p314 = scmp.ne.s32.totalorder %s299, %s313
      %p315 = scmp.eq.s32.totalorder %s37, 0
      %p316 = por %p314, %p315
      %s317 = ssub.s32 %s31, %s38
      %p318 = scmp.eq.s32.totalorder %s317, 0
      %s320 = sadd.s32 %s319, 1
      %s321 = scalar_select %p318, %s319, %s320
      %p324 = pneg %p318
      %p325 = scmp.eq.s32.totalorder %s31, 1
      %p326 = por %p324, %p325
      %p327 = scmp.ne.s32.totalorder %s319, %s322
      %p328 = scmp.eq.s32.totalorder %s31, 0
      %p329 = por %p327, %p328
      %p330 = scmp.ne.s32.totalorder %s319, %s322
      %p331 = scmp.eq.s32.totalorder %s36, 1
      %p332 = por %p330, %p331
      %p333 = scmp.ne.s32.totalorder %s322, %s323
      %p334 = scmp.eq.s32.totalorder %s36, 0
      %p335 = por %p333, %p334
      %p336 = scmp.ne.s32.totalorder %s322, %s323
      %p337 = scmp.eq.s32.totalorder %s37, 1
      %p338 = por %p336, %p337
      %p340 = scmp.ne.s32.totalorder %s323, %s339
      %p341 = scmp.eq.s32.totalorder %s37, 0
      %p342 = por %p340, %p341
      %s343 = ssub.s32 %s31, %s38
      %p344 = scmp.eq.s32.totalorder %s343, 0
      %s346 = sadd.s32 %s345, 1
      %s347 = scalar_select %p344, %s345, %s346
      %p350 = pneg %p344
      %p351 = scmp.eq.s32.totalorder %s31, 1
      %p352 = por %p350, %p351
      %p353 = scmp.ne.s32.totalorder %s345, %s348
      %p354 = scmp.eq.s32.totalorder %s31, 0
      %p355 = por %p353, %p354
      %p356 = scmp.ne.s32.totalorder %s345, %s348
      %p357 = scmp.eq.s32.totalorder %s36, 1
      %p358 = por %p356, %p357
      %p359 = scmp.ne.s32.totalorder %s348, %s349
      %p360 = scmp.eq.s32.totalorder %s36, 0
      %p361 = por %p359, %p360
      %p362 = scmp.ne.s32.totalorder %s348, %s349
      %p363 = scmp.eq.s32.totalorder %s37, 1
      %p364 = por %p362, %p363
      %p366 = scmp.ne.s32.totalorder %s349, %s365
      %p367 = scmp.eq.s32.totalorder %s37, 0
      %p368 = por %p366, %p367
      %p369 = scmp.le.s32.totalorder 1, %s31
      %p370 = scmp.lt.s32.totalorder %s31, 3
      %p371 = pnand %p369, %p370
      %p372 = pneg %p371
      // Predicated region
      $region9: #{tpu_custom_call.1} parent=5 // pred_check
        _
      $region10: #{tpu_custom_call.1} parent=5 // pred_check_branch
        %374 = sbr.rel (%p371) target = $region12
      $region11: #{tpu_custom_call.1} parent=5 // pred_region
        %s375 = ssub.s32 %s31, 1
        // Predicated region
        $region13: #{tpu_custom_call.1} parent=11 // pred_check
          %p376 = pneg %p78
        $region14: #{tpu_custom_call.1} parent=11 // pred_check_branch
          %378 = sbr.rel (%p376) target = $region16
        $region15: #{tpu_custom_call.1} parent=11 // pred_region
          %s380 = ssub.s32 16, 16
          %381 = vsyncadd [#allocation3], %s380
          %s383 = sshll.u32 [#allocation2], 4
          %s384 = int_to_ptr.vmem [resolvable:$true] %s383
          %386 = dma.hbm_to_vmem [thread:$0]  %s1, 16, %s384, [#allocation3]
        $region16: #{tpu_custom_call.1} parent=11 // pred_fallthru
          _
        // Predicated region
        $region17: #{tpu_custom_call.1} parent=11 // pred_check
          %p387 = pneg %p99
        $region18: #{tpu_custom_call.1} parent=11 // pred_check_branch
          %389 = sbr.rel (%p387) target = $region20
        $region19: #{tpu_custom_call.1} parent=11 // pred_region
          %s391 = ssub.s32 16, 16
          %392 = vsyncadd [#allocation6], %s391
          %s394 = sshll.u32 [#allocation5], 4
          %s395 = int_to_ptr.vmem [resolvable:$true] %s394
          %397 = dma.hbm_to_vmem [thread:$0]  %s2, 16, %s395, [#allocation6]
        $region20: #{tpu_custom_call.1} parent=11 // pred_fallthru
          _
        // Predicated region
        $region21: #{tpu_custom_call.1} parent=11 // pred_check
          %p398 = pneg %p120
        $region22: #{tpu_custom_call.1} parent=11 // pred_check_branch
          %400 = sbr.rel (%p398) target = $region24
        $region23: #{tpu_custom_call.1} parent=11 // pred_region
          _
        $region24: #{tpu_custom_call.1} parent=11 // pred_fallthru
          _
        // Predicated region
        $region25: #{tpu_custom_call.1} parent=11 // pred_check
          %p401 = pneg %p141
        $region26: #{tpu_custom_call.1} parent=11 // pred_check_branch
          %403 = sbr.rel (%p401) target = $region28
        $region27: #{tpu_custom_call.1} parent=11 // pred_region
          %s405 = ssub.s32 16, 16
          %406 = vsyncadd [#allocation6], %s405
          %s408 = sshll.u32 [#allocation7], 4
          %s409 = int_to_ptr.vmem [resolvable:$true] %s408
          %411 = dma.hbm_to_vmem [thread:$0]  %s4, 16, %s409, [#allocation6]
        $region28: #{tpu_custom_call.1} parent=11 // pred_fallthru
          _
        // Predicated region
        $region29: #{tpu_custom_call.1} parent=11 // pred_check
          %p412 = pneg %p162
        $region30: #{tpu_custom_call.1} parent=11 // pred_check_branch
          %414 = sbr.rel (%p412) target = $region32
        $region31: #{tpu_custom_call.1} parent=11 // pred_region
          _
        $region32: #{tpu_custom_call.1} parent=11 // pred_fallthru
          _
        // Predicated region
        $region33: #{tpu_custom_call.1} parent=11 // pred_check
          %p415 = pneg %p183
        $region34: #{tpu_custom_call.1} parent=11 // pred_check_branch
          %417 = sbr.rel (%p415) target = $region36
        $region35: #{tpu_custom_call.1} parent=11 // pred_region
          %s419 = ssub.s32 16, 16
          %420 = vsyncadd [#allocation9], %s419
          %s422 = sshll.u32 [#allocation8], 4
          %s423 = int_to_ptr.vmem [resolvable:$true] %s422
          %425 = dma.hbm_to_vmem [thread:$0]  %s6, 16, %s423, [#allocation9]
        $region36: #{tpu_custom_call.1} parent=11 // pred_fallthru
          _
        // Predicated region
        $region37: #{tpu_custom_call.1} parent=11 // pred_check
          %p426 = pneg %p204
        $region38: #{tpu_custom_call.1} parent=11 // pred_check_branch
          %428 = sbr.rel (%p426) target = $region40
        $region39: #{tpu_custom_call.1} parent=11 // pred_region
          %s430 = ssub.s32 16, 16
          %431 = vsyncadd [#allocation9], %s430
          %s433 = sshll.u32 [#allocation10], 4
          %s434 = int_to_ptr.vmem [resolvable:$true] %s433
          %436 = dma.hbm_to_vmem [thread:$0]  %s7, 16, %s434, [#allocation9]
        $region40: #{tpu_custom_call.1} parent=11 // pred_fallthru
          _
        // Predicated region
        $region41: #{tpu_custom_call.1} parent=11 // pred_check
          %p437 = pneg %p225
        $region42: #{tpu_custom_call.1} parent=11 // pred_check_branch
          %439 = sbr.rel (%p437) target = $region44
        $region43: #{tpu_custom_call.1} parent=11 // pred_region
          %s441 = ssub.s32 16, 16
          %442 = vsyncadd [#allocation12], %s441
          %s444 = sshll.u32 [#allocation11], 4
          %s445 = int_to_ptr.vmem [resolvable:$true] %s444
          %447 = dma.hbm_to_vmem [thread:$0]  %s8, 16, %s445, [#allocation12]
        $region44: #{tpu_custom_call.1} parent=11 // pred_fallthru
          _
        // Predicated region
        $region45: #{tpu_custom_call.1} parent=11 // pred_check
          %p448 = pneg %p246
        $region46: #{tpu_custom_call.1} parent=11 // pred_check_branch
          %450 = sbr.rel (%p448) target = $region48
        $region47: #{tpu_custom_call.1} parent=11 // pred_region
          _
        $region48: #{tpu_custom_call.1} parent=11 // pred_fallthru
          _
        // Predicated region
        $region49: #{tpu_custom_call.1} parent=11 // pred_check
          %p451 = pneg %p267
        $region50: #{tpu_custom_call.1} parent=11 // pred_check_branch
          %453 = sbr.rel (%p451) target = $region52
        $region51: #{tpu_custom_call.1} parent=11 // pred_region
          _
        $region52: #{tpu_custom_call.1} parent=11 // pred_fallthru
          _
        // Predicated region
        $region53: #{tpu_custom_call.1} parent=11 // pred_check
          %p454 = pneg %p288
        $region54: #{tpu_custom_call.1} parent=11 // pred_check_branch
          %456 = sbr.rel (%p454) target = $region56
        $region55: #{tpu_custom_call.1} parent=11 // pred_region
          _
        $region56: #{tpu_custom_call.1} parent=11 // pred_fallthru
          _
        // Predicated region
        $region57: #{tpu_custom_call.1} parent=11 // pred_check
          %p457 = pneg %p309
        $region58: #{tpu_custom_call.1} parent=11 // pred_check_branch
          %459 = sbr.rel (%p457) target = $region60
        $region59: #{tpu_custom_call.1} parent=11 // pred_region
          _
        $region60: #{tpu_custom_call.1} parent=11 // pred_fallthru
          _
      $region12: #{tpu_custom_call.1} parent=5 // pred_fallthru
        _
      %p460 = scmp.lt.s32.totalorder %s31, 2
      // Predicated region
      $region61: #{tpu_custom_call.1} parent=5 // pred_check
        %p461 = pneg %p460
      $region62: #{tpu_custom_call.1} parent=5 // pred_check_branch
        %463 = sbr.rel (%p461) target = $region64
      $region63: #{tpu_custom_call.1} parent=5 // pred_region
        // Predicated region
        $region65: #{tpu_custom_call.1} parent=63 // pred_check
          %p464 = pneg %p51
        $region66: #{tpu_custom_call.1} parent=63 // pred_check_branch
          %466 = sbr.rel (%p464) target = $region68
        $region67: #{tpu_custom_call.1} parent=63 // pred_region
          %p467 = scmp.lt.s32.totalorder %s31, 1
          %s468 = scalar_select %p467, %s31, 1
          %s469 = smul.addr %s468, 8
          %s470 = scalar_lea.vmem %s0, %s469
        $region68: #{tpu_custom_call.1} parent=63 // pred_fallthru
          _
      $region64: #{tpu_custom_call.1} parent=5 // pred_fallthru
        _
      %p471 = scmp.le.s32.totalorder 1, %s31
      %p472 = scmp.lt.s32.totalorder %s31, 3
      %p473 = pnand %p471, %p472
      %p474 = pneg %p473
      // Predicated region
      $region69: #{tpu_custom_call.1} parent=5 // pred_check
        _
      $region70: #{tpu_custom_call.1} parent=5 // pred_check_branch
        %476 = sbr.rel (%p473) target = $region72
      $region71: #{tpu_custom_call.1} parent=5 // pred_region
        %s477 = ssub.s32 %s31, 1
        // Predicated region
        $region73: #{tpu_custom_call.1} parent=71 // pred_check
          %p478 = pneg %p78
        $region74: #{tpu_custom_call.1} parent=71 // pred_check_branch
          %480 = sbr.rel (%p478) target = $region76
        $region75: #{tpu_custom_call.1} parent=71 // pred_region
          %481 = dma.done [#allocation3], 16
        $region76: #{tpu_custom_call.1} parent=71 // pred_fallthru
          _
        // Predicated region
        $region77: #{tpu_custom_call.1} parent=71 // pred_check
          %p482 = pneg %p99
        $region78: #{tpu_custom_call.1} parent=71 // pred_check_branch
          %484 = sbr.rel (%p482) target = $region80
        $region79: #{tpu_custom_call.1} parent=71 // pred_region
          %485 = dma.done [#allocation6], 16
        $region80: #{tpu_custom_call.1} parent=71 // pred_fallthru
          _
        // Predicated region
        $region81: #{tpu_custom_call.1} parent=71 // pred_check
          %p486 = pneg %p141
        $region82: #{tpu_custom_call.1} parent=71 // pred_check_branch
          %488 = sbr.rel (%p486) target = $region84
        $region83: #{tpu_custom_call.1} parent=71 // pred_region
          %489 = dma.done [#allocation6], 16
        $region84: #{tpu_custom_call.1} parent=71 // pred_fallthru
          _
        // Predicated region
        $region85: #{tpu_custom_call.1} parent=71 // pred_check
          %p490 = pneg %p183
        $region86: #{tpu_custom_call.1} parent=71 // pred_check_branch
          %492 = sbr.rel (%p490) target = $region88
        $region87: #{tpu_custom_call.1} parent=71 // pred_region
          %493 = dma.done [#allocation9], 16
        $region88: #{tpu_custom_call.1} parent=71 // pred_fallthru
          _
        // Predicated region
        $region89: #{tpu_custom_call.1} parent=71 // pred_check
          %p494 = pneg %p204
        $region90: #{tpu_custom_call.1} parent=71 // pred_check_branch
          %496 = sbr.rel (%p494) target = $region92
        $region91: #{tpu_custom_call.1} parent=71 // pred_region
          %497 = dma.done [#allocation9], 16
        $region92: #{tpu_custom_call.1} parent=71 // pred_fallthru
          _
        // Predicated region
        $region93: #{tpu_custom_call.1} parent=71 // pred_check
          %p498 = pneg %p225
        $region94: #{tpu_custom_call.1} parent=71 // pred_check_branch
          %500 = sbr.rel (%p498) target = $region96
        $region95: #{tpu_custom_call.1} parent=71 // pred_region
          %501 = dma.done [#allocation12], 16
        $region96: #{tpu_custom_call.1} parent=71 // pred_fallthru
          _
        %p502 = scmp.lt.s32.totalorder %s36, 1
        %s503 = scalar_select %p502, %s36, 1
        %s504 = smul.addr %s503, 8
        %s505 = scalar_lea.vmem %s0, %s504
        %p506 = pneg %p57
        %p507 = pneg %p54
        %p508 = pneg %p78
        %p509 = pneg %p75
        %p510 = pneg %p99
        %p511 = pneg %p96
        %p512 = pneg %p120
        %p513 = pneg %p117
        %p514 = pneg %p141
        %p515 = pneg %p138
        %p516 = pneg %p162
        %p517 = pneg %p159
        %p518 = pneg %p183
        %p519 = pneg %p180
        %p520 = pneg %p204
        %p521 = pneg %p201
        %p522 = pneg %p225
        %p523 = pneg %p222
        %p524 = pneg %p246
        %p525 = pneg %p243
        %p526 = pneg %p267
        %p527 = pneg %p264
        %p528 = pneg %p288
        %p529 = pneg %p285
        %p530 = pneg %p309
        %p531 = pneg %p306
        %p532 = pneg %p335
        %p533 = pneg %p332
        %s534 = sand.u32 %s322, 1
        %s535 = scalar_lea.sflag [#allocation4], %s534
        %s536 = sand.u32 %s322, 1
        %s537 = smul.addr %s536, 8
        %s538 = scalar_lea.vmem [#allocation13], %s537
        %p539 = pneg %p361
        %p540 = pneg %p358
        %s541 = sand.u32 %s348, 1
        %s542 = scalar_lea.sflag [#allocation15], %s541
        %s543 = sand.u32 %s348, 1
        %s544 = smul.addr %s543, 8
        %s545 = scalar_lea.vmem [#allocation14], %s544
        %p546 = scmp.lt.s32.totalorder %s36, 1
        %s547 = scalar_select %p546, %s36, 1
        %s548 = smul.addr %s547, 8
        %s549 = scalar_lea.vmem %s0, %s548
        %v551 = vld [vmem:[%s549] sm:$0xff]
        %v552 = vld [vmem:[#allocation2] sm:$0x1]
        %v553 = vld [vmem:[#allocation5] sm:$0x1]
        %vm554 = vcmask 261120
        %v555 = vsel %vm554, %v551, 0.0
        %556 = vadd.xlane.f32.xlu0 %v555
        %v557 = vpop.xlane.xlu0 %556
        %v558 = vrcp.pop 32.0
        %v559 = vmul.f32 %v557, %v558
        %v560 = vsub.f32 %v551, %v559
        %v561 = vmul.f32 %v560, %v560
        %v562 = vsel %vm554, %v561, 0.0
        %563 = vadd.xlane.f32.xlu0 %v562
        %v564 = vpop.xlane.xlu0 %563
        %v565 = vmul.f32 %v564, %v558
        %v566 = vadd.f32 %v565, 1e-12
        %v567 = vrsqrt.pop %v566
        %v568 = vmul.f32 %v560, %v567
        %v570 = vlaneseq
        %v571 = vshrl.u32 %v570, 7
        %v572 = vsub.s32 0, %v571
        %v573 = vrot.slane %v552, %v572
        %v575 = vmul.f32 %v568, %v573
        %v577 = vlaneseq
        %v578 = vshrl.u32 %v577, 7
        %v579 = vsub.s32 0, %v578
        %v580 = vrot.slane %v553, %v579
        %v582 = vadd.f32 %v575, %v580
        %583 = vst.msk [vmem:[%s545] sm:$0xff] %vm554, %v582
        %v584 = vpack.c.bf16 %v582, %v582
        %v585 = vld [vmem:[%s3] sm:$0xf]
        %v586 = vld [vmem:[%s3 + $0x4] sm:$0xf]
        %v587 = vld [vmem:[%s3 + $0x8] sm:$0xf]
        %v588 = vld [vmem:[%s3 + $0xc] sm:$0xf]
        %v589 = vld [vmem:[#allocation7] sm:$0x1]
        %v591 = vlaneseq
        %v592 = vshrl.u32 %v591, 7
        %v593 = vsub.s32 0, %v592
        %v594 = vrot.slane %v589, %v593
        %v600 = vunpack.c.l.b16 %v585
        %v601 = vunpack.c.l.b16 %v586
        %v602 = vunpack.c.l.b16 %v587
        %v603 = vunpack.c.l.b16 %v588
        %v604 = vpack.c.b16 %v601, %v600
        %v605 = vpack.c.b16 %v603, %v602
        %v609 = vsel %vm554, %v584, 0
        %611 = vmatprep.subr.bf16.mxu0 0
        %612 = vmatpush1.bf16.msra.mxu0 0
        %613 = vmatprep.subr.bf16.mxu0 0
        %614 = vmatpush1.bf16.msra.mxu0 0
        %615 = vmatprep.subr.bf16.mxu0 0
        %616 = vmatpush1.bf16.msra.mxu0 0
        %617 = vmatprep.subr.bf16.mxu0 0
        %618 = vmatpush1.bf16.msra.mxu0 0
        %619 = vmatprep.subr.bf16.mxu0 0
        %620 = vmatpush1.bf16.msra.mxu0 0
        %621 = vmatprep.subr.bf16.mxu0 0
        %622 = vmatpush1.bf16.msra.mxu0 0
        %623 = vmatprep.subr.bf16.mxu0 0
        %624 = vmatpush1.bf16.msra.mxu0 %v605
        %625 = vmatprep.subr.bf16.mxu0 0
        %626 = vmatpush1.bf16.msra.mxu0 %v604
        %627 = vmatprep.subr.bf16.mxu0 0
        %628 = vmatpush2.bf16.msra.mxu0 0
        %629 = vmatprep.subr.bf16.mxu0 0
        %630 = vmatpush2.bf16.msra.mxu0 0
        %631 = vmatprep.subr.bf16.mxu0 0
        %632 = vmatpush2.bf16.msra.mxu0 0
        %633 = vmatprep.subr.bf16.mxu0 0
        %634 = vmatpush2.bf16.msra.mxu0 0
        %635 = vmatprep.subr.bf16.mxu0 0
        %636 = vmatpush2.bf16.msra.mxu0 0
        %637 = vmatprep.subr.bf16.mxu0 0
        %638 = vmatpush2.bf16.msra.mxu0 0
        %639 = vmatprep.subr.bf16.mxu0 0
        %640 = vmatpush2.bf16.msra.mxu0 0
        %641 = vmatprep.subr.bf16.mxu0 0
        %642 = vmatpush2.bf16.msra.mxu0 0
        %643 = vmatprep.mubr.bf16.mxu0 0
        %644 = vmatmul.mubr.bf16.gmra.mxu0 %v609
        %v645 = vpop.f32.mrf.mxu0
        %v646 = vadd.f32 %v594, %v645
        %v647 = vpop.f32.mrf.mxu0
        %v648 = vpop.f32.mrf.mxu0
        %v649 = vpop.f32.mrf.mxu0
        %650 = vdwg.mxu0
        %v651 = vmul.f32 %v646, 0.35355338
        %653 = vrot.lane.b32.xlu0 %v651, 120
        %v654 = vpop.permute.xlu0 %653
        %656 = vrot.lane.b32.xlu0 %v651, 112
        %v657 = vpop.permute.xlu0 %656
        %659 = vrot.lane.b32.xlu0 %v651, 104
        %v660 = vpop.permute.xlu0 %659
        %v662 = vcombine.low %v651, %v657
        %v663 = vcombine.high %v651, %v657
        %v665 = vunpack.c.l.s4 1983009808
        %v666 = vunpack.c.0.s8 %v665
        %v667 = vlaneseq
        %v668 = vshrl.u32 %v667, 7
        %v669 = vsub.s32 %v666, %v668
        %v670 = vrot.slane %v662, %v669
        %v672 = vunpack.c.l.s4 1983009808
        %v673 = vunpack.c.0.s8 %v672
        %v674 = vlaneseq
        %v675 = vshrl.u32 %v674, 7
        %v676 = vsub.s32 %v673, %v675
        %v677 = vrot.slane %v663, %v676
        %v678 = vcombine.low %v654, %v660
        %v679 = vcombine.high %v654, %v660
        %v681 = vunpack.c.l.s4 1983009808
        %v682 = vunpack.c.0.s8 %v681
        %v683 = vlaneseq
        %v684 = vshrl.u32 %v683, 7
        %v685 = vsub.s32 %v682, %v684
        %v686 = vrot.slane %v678, %v685
        %v688 = vunpack.c.l.s4 1983009808
        %v689 = vunpack.c.0.s8 %v688
        %v690 = vlaneseq
        %v691 = vshrl.u32 %v690, 7
        %v692 = vsub.s32 %v689, %v691
        %v693 = vrot.slane %v679, %v692
        %v694 = vcombine.low %v670, %v686
        %v695 = vcombine.high %v670, %v686
        %v697 = vunpack.c.l.s4 1934713408
        %v698 = vunpack.c.0.s8 %v697
        %v699 = vlaneseq
        %v700 = vshrl.u32 %v699, 7
        %v701 = vsub.s32 %v698, %v700
        %v702 = vrot.slane %v694, %v701
        %v704 = vunpack.c.l.s4 1934713408
        %v705 = vunpack.c.0.s8 %v704
        %v706 = vlaneseq
        %v707 = vshrl.u32 %v706, 7
        %v708 = vsub.s32 %v705, %v707
        %v709 = vrot.slane %v695, %v708
        %v710 = vcombine.low %v677, %v693
        %v711 = vcombine.high %v677, %v693
        %v713 = vunpack.c.l.s4 1934713408
        %v714 = vunpack.c.0.s8 %v713
        %v715 = vlaneseq
        %v716 = vshrl.u32 %v715, 7
        %v717 = vsub.s32 %v714, %v716
        %v718 = vrot.slane %v710, %v717
        %v720 = vunpack.c.l.s4 1934713408
        %v721 = vunpack.c.0.s8 %v720
        %v722 = vlaneseq
        %v723 = vshrl.u32 %v722, 7
        %v724 = vsub.s32 %v721, %v723
        %v725 = vrot.slane %v711, %v724
        %v726 = vcombine.high %v702, 0.0
        %v727 = vcombine.high %v709, 0.0
        %v728 = vcombine.high %v718, 0.0
        %v729 = vcombine.high %v725, 0.0
        %v730 = vcombine.low %v702, %v709
        %v732 = vunpack.c.l.s4 1983009808
        %v733 = vunpack.c.0.s8 %v732
        %v734 = vlaneseq
        %v735 = vshrl.u32 %v734, 7
        %v736 = vsub.s32 %v733, %v735
        %v737 = vrot.slane %v730, %v736
        %v738 = vcombine.low %v726, %v727
        %v740 = vunpack.c.l.s4 1983009808
        %v741 = vunpack.c.0.s8 %v740
        %v742 = vlaneseq
        %v743 = vshrl.u32 %v742, 7
        %v744 = vsub.s32 %v741, %v743
        %v745 = vrot.slane %v738, %v744
        %v746 = vcombine.low %v718, %v725
        %v748 = vunpack.c.l.s4 1983009808
        %v749 = vunpack.c.0.s8 %v748
        %v750 = vlaneseq
        %v751 = vshrl.u32 %v750, 7
        %v752 = vsub.s32 %v749, %v751
        %v753 = vrot.slane %v746, %v752
        %v754 = vcombine.low %v728, %v729
        %v756 = vunpack.c.l.s4 1983009808
        %v757 = vunpack.c.0.s8 %v756
        %v758 = vlaneseq
        %v759 = vshrl.u32 %v758, 7
        %v760 = vsub.s32 %v757, %v759
        %v761 = vrot.slane %v754, %v760
        %v762 = vcombine.low %v737, %v745
        %v763 = vcombine.high %v737, %v745
        %v765 = vunpack.c.l.s4 1934713408
        %v766 = vunpack.c.0.s8 %v765
        %v767 = vlaneseq
        %v768 = vshrl.u32 %v767, 7
        %v769 = vsub.s32 %v766, %v768
        %v770 = vrot.slane %v762, %v769
        %v772 = vunpack.c.l.s4 1934713408
        %v773 = vunpack.c.0.s8 %v772
        %v774 = vlaneseq
        %v775 = vshrl.u32 %v774, 7
        %v776 = vsub.s32 %v773, %v775
        %v777 = vrot.slane %v763, %v776
        %v778 = vcombine.low %v753, %v761
        %v779 = vcombine.high %v753, %v761
        %v781 = vunpack.c.l.s4 1934713408
        %v782 = vunpack.c.0.s8 %v781
        %v783 = vlaneseq
        %v784 = vshrl.u32 %v783, 7
        %v785 = vsub.s32 %v782, %v784
        %v786 = vrot.slane %v778, %v785
        %v788 = vunpack.c.l.s4 1934713408
        %v789 = vunpack.c.0.s8 %v788
        %v790 = vlaneseq
        %v791 = vshrl.u32 %v790, 7
        %v792 = vsub.s32 %v789, %v791
        %v793 = vrot.slane %v779, %v792
        %v794 = vcombine.low %v770, %v786
        %v795 = vcombine.high %v770, %v786
        %v796 = vcombine.low %v777, %v793
        %v797 = vcombine.high %v777, %v793
        %799 = vrot.lane.b32.xlu0 %v646, 120
        %v800 = vpop.permute.xlu0 %799
        %801 = vrot.lane.b32.xlu0 %v646, 112
        %v802 = vpop.permute.xlu0 %801
        %803 = vrot.lane.b32.xlu0 %v646, 104
        %v804 = vpop.permute.xlu0 %803
        %805 = vrot.lane.b32.xlu0 %v646, 96
        %v806 = vpop.permute.xlu0 %805
        %807 = vrot.lane.b32.xlu0 %v800, 96
        %v808 = vpop.permute.xlu0 %807
        %809 = vrot.lane.b32.xlu0 %v802, 96
        %v810 = vpop.permute.xlu0 %809
        %811 = vrot.lane.b32.xlu0 %v804, 96
        %v812 = vpop.permute.xlu0 %811
        %v817 = vcombine.low %v806, %v810
        %v818 = vcombine.high %v806, %v810
        %v820 = vunpack.c.l.s4 1983009808
        %v821 = vunpack.c.0.s8 %v820
        %v822 = vlaneseq
        %v823 = vshrl.u32 %v822, 7
        %v824 = vsub.s32 %v821, %v823
        %v825 = vrot.slane %v817, %v824
        %v827 = vunpack.c.l.s4 1983009808
        %v828 = vunpack.c.0.s8 %v827
        %v829 = vlaneseq
        %v830 = vshrl.u32 %v829, 7
        %v831 = vsub.s32 %v828, %v830
        %v832 = vrot.slane %v818, %v831
        %v833 = vcombine.low %v808, %v812
        %v834 = vcombine.high %v808, %v812
        %v836 = vunpack.c.l.s4 1983009808
        %v837 = vunpack.c.0.s8 %v836
        %v838 = vlaneseq
        %v839 = vshrl.u32 %v838, 7
        %v840 = vsub.s32 %v837, %v839
        %v841 = vrot.slane %v833, %v840
        %v843 = vunpack.c.l.s4 1983009808
        %v844 = vunpack.c.0.s8 %v843
        %v845 = vlaneseq
        %v846 = vshrl.u32 %v845, 7
        %v847 = vsub.s32 %v844, %v846
        %v848 = vrot.slane %v834, %v847
        %v849 = vcombine.low %v825, %v841
        %v850 = vcombine.high %v825, %v841
        %v852 = vunpack.c.l.s4 1934713408
        %v853 = vunpack.c.0.s8 %v852
        %v854 = vlaneseq
        %v855 = vshrl.u32 %v854, 7
        %v856 = vsub.s32 %v853, %v855
        %v857 = vrot.slane %v849, %v856
        %v859 = vunpack.c.l.s4 1934713408
        %v860 = vunpack.c.0.s8 %v859
        %v861 = vlaneseq
        %v862 = vshrl.u32 %v861, 7
        %v863 = vsub.s32 %v860, %v862
        %v864 = vrot.slane %v850, %v863
        %v865 = vcombine.low %v832, %v848
        %v866 = vcombine.high %v832, %v848
        %v868 = vunpack.c.l.s4 1934713408
        %v869 = vunpack.c.0.s8 %v868
        %v870 = vlaneseq
        %v871 = vshrl.u32 %v870, 7
        %v872 = vsub.s32 %v869, %v871
        %v873 = vrot.slane %v865, %v872
        %v875 = vunpack.c.l.s4 1934713408
        %v876 = vunpack.c.0.s8 %v875
        %v877 = vlaneseq
        %v878 = vshrl.u32 %v877, 7
        %v879 = vsub.s32 %v876, %v878
        %v880 = vrot.slane %v866, %v879
        %v881 = vcombine.high %v857, 0.0
        %v882 = vcombine.high %v864, 0.0
        %v883 = vcombine.high %v873, 0.0
        %v884 = vcombine.high %v880, 0.0
        %v885 = vcombine.low %v857, %v864
        %v887 = vunpack.c.l.s4 1983009808
        %v888 = vunpack.c.0.s8 %v887
        %v889 = vlaneseq
        %v890 = vshrl.u32 %v889, 7
        %v891 = vsub.s32 %v888, %v890
        %v892 = vrot.slane %v885, %v891
        %v893 = vcombine.low %v881, %v882
        %v895 = vunpack.c.l.s4 1983009808
        %v896 = vunpack.c.0.s8 %v895
        %v897 = vlaneseq
        %v898 = vshrl.u32 %v897, 7
        %v899 = vsub.s32 %v896, %v898
        %v900 = vrot.slane %v893, %v899
        %v901 = vcombine.low %v873, %v880
        %v903 = vunpack.c.l.s4 1983009808
        %v904 = vunpack.c.0.s8 %v903
        %v905 = vlaneseq
        %v906 = vshrl.u32 %v905, 7
        %v907 = vsub.s32 %v904, %v906
        %v908 = vrot.slane %v901, %v907
        %v909 = vcombine.low %v883, %v884
        %v911 = vunpack.c.l.s4 1983009808
        %v912 = vunpack.c.0.s8 %v911
        %v913 = vlaneseq
        %v914 = vshrl.u32 %v913, 7
        %v915 = vsub.s32 %v912, %v914
        %v916 = vrot.slane %v909, %v915
        %v917 = vcombine.low %v892, %v900
        %v918 = vcombine.high %v892, %v900
        %v920 = vunpack.c.l.s4 1934713408
        %v921 = vunpack.c.0.s8 %v920
        %v922 = vlaneseq
        %v923 = vshrl.u32 %v922, 7
        %v924 = vsub.s32 %v921, %v923
        %v925 = vrot.slane %v917, %v924
        %v927 = vunpack.c.l.s4 1934713408
        %v928 = vunpack.c.0.s8 %v927
        %v929 = vlaneseq
        %v930 = vshrl.u32 %v929, 7
        %v931 = vsub.s32 %v928, %v930
        %v932 = vrot.slane %v918, %v931
        %v933 = vcombine.low %v908, %v916
        %v934 = vcombine.high %v908, %v916
        %v936 = vunpack.c.l.s4 1934713408
        %v937 = vunpack.c.0.s8 %v936
        %v938 = vlaneseq
        %v939 = vshrl.u32 %v938, 7
        %v940 = vsub.s32 %v937, %v939
        %v941 = vrot.slane %v933, %v940
        %v943 = vunpack.c.l.s4 1934713408
        %v944 = vunpack.c.0.s8 %v943
        %v945 = vlaneseq
        %v946 = vshrl.u32 %v945, 7
        %v947 = vsub.s32 %v944, %v946
        %v948 = vrot.slane %v934, %v947
        %v949 = vcombine.low %v925, %v941
        %v950 = vcombine.high %v925, %v941
        %v951 = vcombine.low %v932, %v948
        %v952 = vcombine.high %v932, %v948
        %953 = vrot.lane.b32.xlu0 %v646, 64
        %v954 = vpop.permute.xlu0 %953
        %955 = vrot.lane.b32.xlu0 %v800, 64
        %v956 = vpop.permute.xlu0 %955
        %957 = vrot.lane.b32.xlu0 %v802, 64
        %v958 = vpop.permute.xlu0 %957
        %959 = vrot.lane.b32.xlu0 %v804, 64
        %v960 = vpop.permute.xlu0 %959
        %v965 = vcombine.low %v954, %v958
        %v966 = vcombine.high %v954, %v958
        %v968 = vunpack.c.l.s4 1983009808
        %v969 = vunpack.c.0.s8 %v968
        %v970 = vlaneseq
        %v971 = vshrl.u32 %v970, 7
        %v972 = vsub.s32 %v969, %v971
        %v973 = vrot.slane %v965, %v972
        %v975 = vunpack.c.l.s4 1983009808
        %v976 = vunpack.c.0.s8 %v975
        %v977 = vlaneseq
        %v978 = vshrl.u32 %v977, 7
        %v979 = vsub.s32 %v976, %v978
        %v980 = vrot.slane %v966, %v979
        %v981 = vcombine.low %v956, %v960
        %v982 = vcombine.high %v956, %v960
        %v984 = vunpack.c.l.s4 1983009808
        %v985 = vunpack.c.0.s8 %v984
        %v986 = vlaneseq
        %v987 = vshrl.u32 %v986, 7
        %v988 = vsub.s32 %v985, %v987
        %v989 = vrot.slane %v981, %v988
        %v991 = vunpack.c.l.s4 1983009808
        %v992 = vunpack.c.0.s8 %v991
        %v993 = vlaneseq
        %v994 = vshrl.u32 %v993, 7
        %v995 = vsub.s32 %v992, %v994
        %v996 = vrot.slane %v982, %v995
        %v997 = vcombine.low %v973, %v989
        %v998 = vcombine.high %v973, %v989
        %v1000 = vunpack.c.l.s4 1934713408
        %v1001 = vunpack.c.0.s8 %v1000
        %v1002 = vlaneseq
        %v1003 = vshrl.u32 %v1002, 7
        %v1004 = vsub.s32 %v1001, %v1003
        %v1005 = vrot.slane %v997, %v1004
        %v1007 = vunpack.c.l.s4 1934713408
        %v1008 = vunpack.c.0.s8 %v1007
        %v1009 = vlaneseq
        %v1010 = vshrl.u32 %v1009, 7
        %v1011 = vsub.s32 %v1008, %v1010
        %v1012 = vrot.slane %v998, %v1011
        %v1013 = vcombine.low %v980, %v996
        %v1014 = vcombine.high %v980, %v996
        %v1016 = vunpack.c.l.s4 1934713408
        %v1017 = vunpack.c.0.s8 %v1016
        %v1018 = vlaneseq
        %v1019 = vshrl.u32 %v1018, 7
        %v1020 = vsub.s32 %v1017, %v1019
        %v1021 = vrot.slane %v1013, %v1020
        %v1023 = vunpack.c.l.s4 1934713408
        %v1024 = vunpack.c.0.s8 %v1023
        %v1025 = vlaneseq
        %v1026 = vshrl.u32 %v1025, 7
        %v1027 = vsub.s32 %v1024, %v1026
        %v1028 = vrot.slane %v1014, %v1027
        %v1029 = vcombine.high %v1005, 0.0
        %v1030 = vcombine.high %v1012, 0.0
        %v1031 = vcombine.high %v1021, 0.0
        %v1032 = vcombine.high %v1028, 0.0
        %v1033 = vcombine.low %v1005, %v1012
        %v1035 = vunpack.c.l.s4 1983009808
        %v1036 = vunpack.c.0.s8 %v1035
        %v1037 = vlaneseq
        %v1038 = vshrl.u32 %v1037, 7
        %v1039 = vsub.s32 %v1036, %v1038
        %v1040 = vrot.slane %v1033, %v1039
        %v1041 = vcombine.low %v1029, %v1030
        %v1043 = vunpack.c.l.s4 1983009808
        %v1044 = vunpack.c.0.s8 %v1043
        %v1045 = vlaneseq
        %v1046 = vshrl.u32 %v1045, 7
        %v1047 = vsub.s32 %v1044, %v1046
        %v1048 = vrot.slane %v1041, %v1047
        %v1049 = vcombine.low %v1021, %v1028
        %v1051 = vunpack.c.l.s4 1983009808
        %v1052 = vunpack.c.0.s8 %v1051
        %v1053 = vlaneseq
        %v1054 = vshrl.u32 %v1053, 7
        %v1055 = vsub.s32 %v1052, %v1054
        %v1056 = vrot.slane %v1049, %v1055
        %v1057 = vcombine.low %v1031, %v1032
        %v1059 = vunpack.c.l.s4 1983009808
        %v1060 = vunpack.c.0.s8 %v1059
        %v1061 = vlaneseq
        %v1062 = vshrl.u32 %v1061, 7
        %v1063 = vsub.s32 %v1060, %v1062
        %v1064 = vrot.slane %v1057, %v1063
        %v1065 = vcombine.low %v1040, %v1048
        %v1066 = vcombine.high %v1040, %v1048
        %v1068 = vunpack.c.l.s4 1934713408
        %v1069 = vunpack.c.0.s8 %v1068
        %v1070 = vlaneseq
        %v1071 = vshrl.u32 %v1070, 7
        %v1072 = vsub.s32 %v1069, %v1071
        %v1073 = vrot.slane %v1065, %v1072
        %v1075 = vunpack.c.l.s4 1934713408
        %v1076 = vunpack.c.0.s8 %v1075
        %v1077 = vlaneseq
        %v1078 = vshrl.u32 %v1077, 7
        %v1079 = vsub.s32 %v1076, %v1078
        %v1080 = vrot.slane %v1066, %v1079
        %v1081 = vcombine.low %v1056, %v1064
        %v1082 = vcombine.high %v1056, %v1064
        %v1084 = vunpack.c.l.s4 1934713408
        %v1085 = vunpack.c.0.s8 %v1084
        %v1086 = vlaneseq
        %v1087 = vshrl.u32 %v1086, 7
        %v1088 = vsub.s32 %v1085, %v1087
        %v1089 = vrot.slane %v1081, %v1088
        %v1091 = vunpack.c.l.s4 1934713408
        %v1092 = vunpack.c.0.s8 %v1091
        %v1093 = vlaneseq
        %v1094 = vshrl.u32 %v1093, 7
        %v1095 = vsub.s32 %v1092, %v1094
        %v1096 = vrot.slane %v1082, %v1095
        %v1097 = vcombine.low %v1073, %v1089
        %v1098 = vcombine.high %v1073, %v1089
        %v1099 = vcombine.low %v1080, %v1096
        %v1100 = vcombine.high %v1080, %v1096
        %v1101 = vpack.c.bf16 %v794, %v794
        %v1102 = vpack.c.bf16 %v795, %v795
        %v1103 = vpack.c.bf16 %v796, %v796
        %v1104 = vpack.c.bf16 %v797, %v797
        %v1105 = vpack.c.bf16 %v949, %v949
        %v1106 = vpack.c.bf16 %v950, %v950
        %v1107 = vpack.c.bf16 %v951, %v951
        %v1108 = vpack.c.bf16 %v952, %v952
        %vm1109 = vcmask 64512
        %v1111 = vsel %vm1109, %v1101, 0
        %v1114 = vsel %vm1109, %v1105, 0
        %1116 = vmatprep.subr.bf16.mxu0 0
        %1117 = vmatpush1.bf16.xpose.msra.mxu0 0
        %1118 = vmatprep.subr.bf16.mxu0 0
        %1119 = vmatpush1.bf16.xpose.msra.mxu0 0
        %1120 = vmatprep.subr.bf16.mxu0 0
        %1121 = vmatpush1.bf16.xpose.msra.mxu0 0
        %1122 = vmatprep.subr.bf16.mxu0 0
        %1123 = vmatpush1.bf16.xpose.msra.mxu0 0
        %1124 = vmatprep.subr.bf16.mxu0 0
        %1125 = vmatpush1.bf16.xpose.msra.mxu0 0
        %1126 = vmatprep.subr.bf16.mxu0 0
        %1127 = vmatpush1.bf16.xpose.msra.mxu0 0
        %1128 = vmatprep.subr.bf16.mxu0 0
        %1129 = vmatpush1.bf16.xpose.msra.mxu0 0
        %1130 = vmatprep.subr.bf16.mxu0 0
        %1131 = vmatpush1.bf16.xpose.msra.mxu0 %v1114
        %1132 = vmatprep.subr.bf16.mxu0 0
        %1133 = vmatpush2.bf16.xpose.msra.mxu0 0
        %1134 = vmatprep.subr.bf16.mxu0 0
        %1135 = vmatpush2.bf16.xpose.msra.mxu0 0
        %1136 = vmatprep.subr.bf16.mxu0 0
        %1137 = vmatpush2.bf16.xpose.msra.mxu0 0
        %1138 = vmatprep.subr.bf16.mxu0 0
        %1139 = vmatpush2.bf16.xpose.msra.mxu0 0
        %1140 = vmatprep.subr.bf16.mxu0 0
        %1141 = vmatpush2.bf16.xpose.msra.mxu0 0
        %1142 = vmatprep.subr.bf16.mxu0 0
        %1143 = vmatpush2.bf16.xpose.msra.mxu0 0
        %1144 = vmatprep.subr.bf16.mxu0 0
        %1145 = vmatpush2.bf16.xpose.msra.mxu0 0
        %1146 = vmatprep.subr.bf16.mxu0 0
        %1147 = vmatpush2.bf16.xpose.msra.mxu0 0
        %1148 = vmatprep.mubr.bf16.mxu0 0
        %1149 = vmatmul.mubr.bf16.gmra.mxu0 %v1111
        %v1150 = vpop.f32.mrf.mxu0
        %v1151 = vadd.f32 0.0, %v1150
        %v1152 = vpop.f32.mrf.mxu0
        %v1153 = vpop.f32.mrf.mxu0
        %v1154 = vpop.f32.mrf.mxu0
        %1155 = vdwg.mxu0
        %v1157 = vsel %vm1109, %v1102, 0
        %v1160 = vsel %vm1109, %v1106, 0
        %1162 = vmatprep.subr.bf16.mxu0 0
        %1163 = vmatpush1.bf16.xpose.msra.mxu0 0
        %1164 = vmatprep.subr.bf16.mxu0 0
        %1165 = vmatpush1.bf16.xpose.msra.mxu0 0
        %1166 = vmatprep.subr.bf16.mxu0 0
        %1167 = vmatpush1.bf16.xpose.msra.mxu0 0
        %1168 = vmatprep.subr.bf16.mxu0 0
        %1169 = vmatpush1.bf16.xpose.msra.mxu0 0
        %1170 = vmatprep.subr.bf16.mxu0 0
        %1171 = vmatpush1.bf16.xpose.msra.mxu0 0
        %1172 = vmatprep.subr.bf16.mxu0 0
        %1173 = vmatpush1.bf16.xpose.msra.mxu0 0
        %1174 = vmatprep.subr.bf16.mxu0 0
        %1175 = vmatpush1.bf16.xpose.msra.mxu0 0
        %1176 = vmatprep.subr.bf16.mxu0 0
        %1177 = vmatpush1.bf16.xpose.msra.mxu0 %v1160
        %1178 = vmatprep.subr.bf16.mxu0 0
        %1179 = vmatpush2.bf16.xpose.msra.mxu0 0
        %1180 = vmatprep.subr.bf16.mxu0 0
        %1181 = vmatpush2.bf16.xpose.msra.mxu0 0
        %1182 = vmatprep.subr.bf16.mxu0 0
        %1183 = vmatpush2.bf16.xpose.msra.mxu0 0
        %1184 = vmatprep.subr.bf16.mxu0 0
        %1185 = vmatpush2.bf16.xpose.msra.mxu0 0
        %1186 = vmatprep.subr.bf16.mxu0 0
        %1187 = vmatpush2.bf16.xpose.msra.mxu0 0
        %1188 = vmatprep.subr.bf16.mxu0 0
        %1189 = vmatpush2.bf16.xpose.msra.mxu0 0
        %1190 = vmatprep.subr.bf16.mxu0 0
        %1191 = vmatpush2.bf16.xpose.msra.mxu0 0
        %1192 = vmatprep.subr.bf16.mxu0 0
        %1193 = vmatpush2.bf16.xpose.msra.mxu0 0
        %1194 = vmatprep.mubr.bf16.mxu0 0
        %1195 = vmatmul.mubr.bf16.gmra.mxu0 %v1157
        %v1196 = vpop.f32.mrf.mxu0
        %v1197 = vadd.f32 0.0, %v1196
        %v1198 = vpop.f32.mrf.mxu0
        %v1199 = vpop.f32.mrf.mxu0
        %v1200 = vpop.f32.mrf.mxu0
        %1201 = vdwg.mxu0
        %v1203 = vsel %vm1109, %v1103, 0
        %v1206 = vsel %vm1109, %v1107, 0
        %1208 = vmatprep.subr.bf16.mxu0 0
        %1209 = vmatpush1.bf16.xpose.msra.mxu0 0
        %1210 = vmatprep.subr.bf16.mxu0 0
        %1211 = vmatpush1.bf16.xpose.msra.mxu0 0
        %1212 = vmatprep.subr.bf16.mxu0 0
        %1213 = vmatpush1.bf16.xpose.msra.mxu0 0
        %1214 = vmatprep.subr.bf16.mxu0 0
        %1215 = vmatpush1.bf16.xpose.msra.mxu0 0
        %1216 = vmatprep.subr.bf16.mxu0 0
        %1217 = vmatpush1.bf16.xpose.msra.mxu0 0
        %1218 = vmatprep.subr.bf16.mxu0 0
        %1219 = vmatpush1.bf16.xpose.msra.mxu0 0
        %1220 = vmatprep.subr.bf16.mxu0 0
        %1221 = vmatpush1.bf16.xpose.msra.mxu0 0
        %1222 = vmatprep.subr.bf16.mxu0 0
        %1223 = vmatpush1.bf16.xpose.msra.mxu0 %v1206
        %1224 = vmatprep.subr.bf16.mxu0 0
        %1225 = vmatpush2.bf16.xpose.msra.mxu0 0
        %1226 = vmatprep.subr.bf16.mxu0 0
        %1227 = vmatpush2.bf16.xpose.msra.mxu0 0
        %1228 = vmatprep.subr.bf16.mxu0 0
        %1229 = vmatpush2.bf16.xpose.msra.mxu0 0
        %1230 = vmatprep.subr.bf16.mxu0 0
        %1231 = vmatpush2.bf16.xpose.msra.mxu0 0
        %1232 = vmatprep.subr.bf16.mxu0 0
        %1233 = vmatpush2.bf16.xpose.msra.mxu0 0
        %1234 = vmatprep.subr.bf16.mxu0 0
        %1235 = vmatpush2.bf16.xpose.msra.mxu0 0
        %1236 = vmatprep.subr.bf16.mxu0 0
        %1237 = vmatpush2.bf16.xpose.msra.mxu0 0
        %1238 = vmatprep.subr.bf16.mxu0 0
        %1239 = vmatpush2.bf16.xpose.msra.mxu0 0
        %1240 = vmatprep.mubr.bf16.mxu0 0
        %1241 = vmatmul.mubr.bf16.gmra.mxu0 %v1203
        %v1242 = vpop.f32.mrf.mxu0
        %v1243 = vadd.f32 0.0, %v1242
        %v1244 = vpop.f32.mrf.mxu0
        %v1245 = vpop.f32.mrf.mxu0
        %v1246 = vpop.f32.mrf.mxu0
        %1247 = vdwg.mxu0
        %v1249 = vsel %vm1109, %v1104, 0
        %v1252 = vsel %vm1109, %v1108, 0
        %1254 = vmatprep.subr.bf16.mxu0 0
        %1255 = vmatpush1.bf16.xpose.msra.mxu0 0
        %1256 = vmatprep.subr.bf16.mxu0 0
        %1257 = vmatpush1.bf16.xpose.msra.mxu0 0
        %1258 = vmatprep.subr.bf16.mxu0 0
        %1259 = vmatpush1.bf16.xpose.msra.mxu0 0
        %1260 = vmatprep.subr.bf16.mxu0 0
        %1261 = vmatpush1.bf16.xpose.msra.mxu0 0
        %1262 = vmatprep.subr.bf16.mxu0 0
        %1263 = vmatpush1.bf16.xpose.msra.mxu0 0
        %1264 = vmatprep.subr.bf16.mxu0 0
        %1265 = vmatpush1.bf16.xpose.msra.mxu0 0
        %1266 = vmatprep.subr.bf16.mxu0 0
        %1267 = vmatpush1.bf16.xpose.msra.mxu0 0
        %1268 = vmatprep.subr.bf16.mxu0 0
        %1269 = vmatpush1.bf16.xpose.msra.mxu0 %v1252
        %1270 = vmatprep.subr.bf16.mxu0 0
        %1271 = vmatpush2.bf16.xpose.msra.mxu0 0
        %1272 = vmatprep.subr.bf16.mxu0 0
        %1273 = vmatpush2.bf16.xpose.msra.mxu0 0
        %1274 = vmatprep.subr.bf16.mxu0 0
        %1275 = vmatpush2.bf16.xpose.msra.mxu0 0
        %1276 = vmatprep.subr.bf16.mxu0 0
        %1277 = vmatpush2.bf16.xpose.msra.mxu0 0
        %1278 = vmatprep.subr.bf16.mxu0 0
        %1279 = vmatpush2.bf16.xpose.msra.mxu0 0
        %1280 = vmatprep.subr.bf16.mxu0 0
        %1281 = vmatpush2.bf16.xpose.msra.mxu0 0
        %1282 = vmatprep.subr.bf16.mxu0 0
        %1283 = vmatpush2.bf16.xpose.msra.mxu0 0
        %1284 = vmatprep.subr.bf16.mxu0 0
        %1285 = vmatpush2.bf16.xpose.msra.mxu0 0
        %1286 = vmatprep.mubr.bf16.mxu0 0
        %1287 = vmatmul.mubr.bf16.gmra.mxu0 %v1249
        %v1288 = vpop.f32.mrf.mxu0
        %v1289 = vadd.f32 0.0, %v1288
        %v1290 = vpop.f32.mrf.mxu0
        %v1291 = vpop.f32.mrf.mxu0
        %v1292 = vpop.f32.mrf.mxu0
        %1293 = vdwg.mxu0
        %v1294 = vsel %vm1109, %v1151, -inf
        %1295 = vmax.xlane.f32.xlu0 %v1294
        %v1296 = vpop.xlane.xlu0 %1295
        %v1297 = vsel %vm1109, %v1197, -inf
        %1298 = vmax.xlane.f32.xlu0 %v1297
        %v1299 = vpop.xlane.xlu0 %1298
        %v1300 = vsel %vm1109, %v1243, -inf
        %1301 = vmax.xlane.f32.xlu0 %v1300
        %v1302 = vpop.xlane.xlu0 %1301
        %v1303 = vsel %vm1109, %v1289, -inf
        %1304 = vmax.xlane.f32.xlu0 %v1303
        %v1305 = vpop.xlane.xlu0 %1304
        %v1306 = vsub.f32 %v1151, %v1296
        %v1307 = vsub.f32 %v1197, %v1299
        %v1308 = vsub.f32 %v1243, %v1302
        %v1309 = vsub.f32 %v1289, %v1305
        %v1310 = vmul.f32 %v1306, 1.442695
        %v1311 = vpow.pop %v1310
        %v1312 = vmul.f32 %v1307, 1.442695
        %v1313 = vpow.pop %v1312
        %v1314 = vmul.f32 %v1308, 1.442695
        %v1315 = vpow.pop %v1314
        %v1316 = vmul.f32 %v1309, 1.442695
        %v1317 = vpow.pop %v1316
        %v1318 = vsel %vm1109, %v1311, 0.0
        %1319 = vadd.xlane.f32.xlu0 %v1318
        %v1320 = vpop.xlane.xlu0 %1319
        %v1321 = vsel %vm1109, %v1313, 0.0
        %1322 = vadd.xlane.f32.xlu0 %v1321
        %v1323 = vpop.xlane.xlu0 %1322
        %v1324 = vsel %vm1109, %v1315, 0.0
        %1325 = vadd.xlane.f32.xlu0 %v1324
        %v1326 = vpop.xlane.xlu0 %1325
        %v1327 = vsel %vm1109, %v1317, 0.0
        %1328 = vadd.xlane.f32.xlu0 %v1327
        %v1329 = vpop.xlane.xlu0 %1328
        %v1330 = vrcp.pop %v1320
        %v1331 = vrcp.pop %v1323
        %v1332 = vrcp.pop %v1326
        %v1333 = vrcp.pop %v1329
        %v1334 = vmul.f32 %v1311, %v1330
        %v1335 = vmul.f32 %v1313, %v1331
        %v1336 = vmul.f32 %v1315, %v1332
        %v1337 = vmul.f32 %v1317, %v1333
        %v1338 = vpack.c.bf16 %v1334, %v1334
        %v1339 = vpack.c.bf16 %v1335, %v1335
        %v1340 = vpack.c.bf16 %v1336, %v1336
        %v1341 = vpack.c.bf16 %v1337, %v1337
        %v1342 = vpack.c.bf16 %v1097, %v1097
        %v1343 = vpack.c.bf16 %v1098, %v1098
        %v1344 = vpack.c.bf16 %v1099, %v1099
        %v1345 = vpack.c.bf16 %v1100, %v1100
        %v1347 = vsel %vm1109, %v1338, 0
        %vm1349 = vcmask 1043456
        %v1351 = vsel %vm1349, %v1342, 0
        %1353 = vmatprep.subr.bf16.mxu0 0
        %1354 = vmatpush1.bf16.msra.mxu0 0
        %1355 = vmatprep.subr.bf16.mxu0 0
        %1356 = vmatpush1.bf16.msra.mxu0 0
        %1357 = vmatprep.subr.bf16.mxu0 0
        %1358 = vmatpush1.bf16.msra.mxu0 0
        %1359 = vmatprep.subr.bf16.mxu0 0
        %1360 = vmatpush1.bf16.msra.mxu0 0
        %1361 = vmatprep.subr.bf16.mxu0 0
        %1362 = vmatpush1.bf16.msra.mxu0 0
        %1363 = vmatprep.subr.bf16.mxu0 0
        %1364 = vmatpush1.bf16.msra.mxu0 0
        %1365 = vmatprep.subr.bf16.mxu0 0
        %1366 = vmatpush1.bf16.msra.mxu0 0
        %1367 = vmatprep.subr.bf16.mxu0 0
        %1368 = vmatpush1.bf16.msra.mxu0 %v1351
        %1369 = vmatprep.subr.bf16.mxu0 0
        %1370 = vmatpush2.bf16.msra.mxu0 0
        %1371 = vmatprep.subr.bf16.mxu0 0
        %1372 = vmatpush2.bf16.msra.mxu0 0
        %1373 = vmatprep.subr.bf16.mxu0 0
        %1374 = vmatpush2.bf16.msra.mxu0 0
        %1375 = vmatprep.subr.bf16.mxu0 0
        %1376 = vmatpush2.bf16.msra.mxu0 0
        %1377 = vmatprep.subr.bf16.mxu0 0
        %1378 = vmatpush2.bf16.msra.mxu0 0
        %1379 = vmatprep.subr.bf16.mxu0 0
        %1380 = vmatpush2.bf16.msra.mxu0 0
        %1381 = vmatprep.subr.bf16.mxu0 0
        %1382 = vmatpush2.bf16.msra.mxu0 0
        %1383 = vmatprep.subr.bf16.mxu0 0
        %1384 = vmatpush2.bf16.msra.mxu0 0
        %1385 = vmatprep.mubr.bf16.mxu0 0
        %1386 = vmatmul.mubr.bf16.gmra.mxu0 %v1347
        %v1387 = vpop.f32.mrf.mxu0
        %v1388 = vadd.f32 0.0, %v1387
        %v1389 = vpop.f32.mrf.mxu0
        %v1390 = vpop.f32.mrf.mxu0
        %v1391 = vpop.f32.mrf.mxu0
        %1392 = vdwg.mxu0
        %v1394 = vsel %vm1109, %v1339, 0
        %v1397 = vsel %vm1349, %v1343, 0
        %1399 = vmatprep.subr.bf16.mxu0 0
        %1400 = vmatpush1.bf16.msra.mxu0 0
        %1401 = vmatprep.subr.bf16.mxu0 0
        %1402 = vmatpush1.bf16.msra.mxu0 0
        %1403 = vmatprep.subr.bf16.mxu0 0
        %1404 = vmatpush1.bf16.msra.mxu0 0
        %1405 = vmatprep.subr.bf16.mxu0 0
        %1406 = vmatpush1.bf16.msra.mxu0 0
        %1407 = vmatprep.subr.bf16.mxu0 0
        %1408 = vmatpush1.bf16.msra.mxu0 0
        %1409 = vmatprep.subr.bf16.mxu0 0
        %1410 = vmatpush1.bf16.msra.mxu0 0
        %1411 = vmatprep.subr.bf16.mxu0 0
        %1412 = vmatpush1.bf16.msra.mxu0 0
        %1413 = vmatprep.subr.bf16.mxu0 0
        %1414 = vmatpush1.bf16.msra.mxu0 %v1397
        %1415 = vmatprep.subr.bf16.mxu0 0
        %1416 = vmatpush2.bf16.msra.mxu0 0
        %1417 = vmatprep.subr.bf16.mxu0 0
        %1418 = vmatpush2.bf16.msra.mxu0 0
        %1419 = vmatprep.subr.bf16.mxu0 0
        %1420 = vmatpush2.bf16.msra.mxu0 0
        %1421 = vmatprep.subr.bf16.mxu0 0
        %1422 = vmatpush2.bf16.msra.mxu0 0
        %1423 = vmatprep.subr.bf16.mxu0 0
        %1424 = vmatpush2.bf16.msra.mxu0 0
        %1425 = vmatprep.subr.bf16.mxu0 0
        %1426 = vmatpush2.bf16.msra.mxu0 0
        %1427 = vmatprep.subr.bf16.mxu0 0
        %1428 = vmatpush2.bf16.msra.mxu0 0
        %1429 = vmatprep.subr.bf16.mxu0 0
        %1430 = vmatpush2.bf16.msra.mxu0 0
        %1431 = vmatprep.mubr.bf16.mxu0 0
        %1432 = vmatmul.mubr.bf16.gmra.mxu0 %v1394
        %v1433 = vpop.f32.mrf.mxu0
        %v1434 = vadd.f32 0.0, %v1433
        %v1435 = vpop.f32.mrf.mxu0
        %v1436 = vpop.f32.mrf.mxu0
        %v1437 = vpop.f32.mrf.mxu0
        %1438 = vdwg.mxu0
        %v1440 = vsel %vm1109, %v1340, 0
        %v1443 = vsel %vm1349, %v1344, 0
        %1445 = vmatprep.subr.bf16.mxu0 0
        %1446 = vmatpush1.bf16.msra.mxu0 0
        %1447 = vmatprep.subr.bf16.mxu0 0
        %1448 = vmatpush1.bf16.msra.mxu0 0
        %1449 = vmatprep.subr.bf16.mxu0 0
        %1450 = vmatpush1.bf16.msra.mxu0 0
        %1451 = vmatprep.subr.bf16.mxu0 0
        %1452 = vmatpush1.bf16.msra.mxu0 0
        %1453 = vmatprep.subr.bf16.mxu0 0
        %1454 = vmatpush1.bf16.msra.mxu0 0
        %1455 = vmatprep.subr.bf16.mxu0 0
        %1456 = vmatpush1.bf16.msra.mxu0 0
        %1457 = vmatprep.subr.bf16.mxu0 0
        %1458 = vmatpush1.bf16.msra.mxu0 0
        %1459 = vmatprep.subr.bf16.mxu0 0
        %1460 = vmatpush1.bf16.msra.mxu0 %v1443
        %1461 = vmatprep.subr.bf16.mxu0 0
        %1462 = vmatpush2.bf16.msra.mxu0 0
        %1463 = vmatprep.subr.bf16.mxu0 0
        %1464 = vmatpush2.bf16.msra.mxu0 0
        %1465 = vmatprep.subr.bf16.mxu0 0
        %1466 = vmatpush2.bf16.msra.mxu0 0
        %1467 = vmatprep.subr.bf16.mxu0 0
        %1468 = vmatpush2.bf16.msra.mxu0 0
        %1469 = vmatprep.subr.bf16.mxu0 0
        %1470 = vmatpush2.bf16.msra.mxu0 0
        %1471 = vmatprep.subr.bf16.mxu0 0
        %1472 = vmatpush2.bf16.msra.mxu0 0
        %1473 = vmatprep.subr.bf16.mxu0 0
        %1474 = vmatpush2.bf16.msra.mxu0 0
        %1475 = vmatprep.subr.bf16.mxu0 0
        %1476 = vmatpush2.bf16.msra.mxu0 0
        %1477 = vmatprep.mubr.bf16.mxu0 0
        %1478 = vmatmul.mubr.bf16.gmra.mxu0 %v1440
        %v1479 = vpop.f32.mrf.mxu0
        %v1480 = vadd.f32 0.0, %v1479
        %v1481 = vpop.f32.mrf.mxu0
        %v1482 = vpop.f32.mrf.mxu0
        %v1483 = vpop.f32.mrf.mxu0
        %1484 = vdwg.mxu0
        %v1486 = vsel %vm1109, %v1341, 0
        %v1489 = vsel %vm1349, %v1345, 0
        %1491 = vmatprep.subr.bf16.mxu0 0
        %1492 = vmatpush1.bf16.msra.mxu0 0
        %1493 = vmatprep.subr.bf16.mxu0 0
        %1494 = vmatpush1.bf16.msra.mxu0 0
        %1495 = vmatprep.subr.bf16.mxu0 0
        %1496 = vmatpush1.bf16.msra.mxu0 0
        %1497 = vmatprep.subr.bf16.mxu0 0
        %1498 = vmatpush1.bf16.msra.mxu0 0
        %1499 = vmatprep.subr.bf16.mxu0 0
        %1500 = vmatpush1.bf16.msra.mxu0 0
        %1501 = vmatprep.subr.bf16.mxu0 0
        %1502 = vmatpush1.bf16.msra.mxu0 0
        %1503 = vmatprep.subr.bf16.mxu0 0
        %1504 = vmatpush1.bf16.msra.mxu0 0
        %1505 = vmatprep.subr.bf16.mxu0 0
        %1506 = vmatpush1.bf16.msra.mxu0 %v1489
        %1507 = vmatprep.subr.bf16.mxu0 0
        %1508 = vmatpush2.bf16.msra.mxu0 0
        %1509 = vmatprep.subr.bf16.mxu0 0
        %1510 = vmatpush2.bf16.msra.mxu0 0
        %1511 = vmatprep.subr.bf16.mxu0 0
        %1512 = vmatpush2.bf16.msra.mxu0 0
        %1513 = vmatprep.subr.bf16.mxu0 0
        %1514 = vmatpush2.bf16.msra.mxu0 0
        %1515 = vmatprep.subr.bf16.mxu0 0
        %1516 = vmatpush2.bf16.msra.mxu0 0
        %1517 = vmatprep.subr.bf16.mxu0 0
        %1518 = vmatpush2.bf16.msra.mxu0 0
        %1519 = vmatprep.subr.bf16.mxu0 0
        %1520 = vmatpush2.bf16.msra.mxu0 0
        %1521 = vmatprep.subr.bf16.mxu0 0
        %1522 = vmatpush2.bf16.msra.mxu0 0
        %1523 = vmatprep.mubr.bf16.mxu0 0
        %1524 = vmatmul.mubr.bf16.gmra.mxu0 %v1486
        %v1525 = vpop.f32.mrf.mxu0
        %v1526 = vadd.f32 0.0, %v1525
        %v1527 = vpop.f32.mrf.mxu0
        %v1528 = vpop.f32.mrf.mxu0
        %v1529 = vpop.f32.mrf.mxu0
        %1530 = vdwg.mxu0
        %v1531 = vcombine.low %v1388, %v1480
        %v1532 = vcombine.high %v1388, %v1480
        %v1534 = vunpack.c.l.s4 1983009808
        %v1535 = vunpack.c.0.s8 %v1534
        %v1536 = vlaneseq
        %v1537 = vshrl.u32 %v1536, 7
        %v1538 = vsub.s32 %v1535, %v1537
        %v1539 = vrot.slane %v1531, %v1538
        %v1541 = vunpack.c.l.s4 1983009808
        %v1542 = vunpack.c.0.s8 %v1541
        %v1543 = vlaneseq
        %v1544 = vshrl.u32 %v1543, 7
        %v1545 = vsub.s32 %v1542, %v1544
        %v1546 = vrot.slane %v1532, %v1545
        %v1547 = vcombine.low %v1434, %v1526
        %v1548 = vcombine.high %v1434, %v1526
        %v1550 = vunpack.c.l.s4 1983009808
        %v1551 = vunpack.c.0.s8 %v1550
        %v1552 = vlaneseq
        %v1553 = vshrl.u32 %v1552, 7
        %v1554 = vsub.s32 %v1551, %v1553
        %v1555 = vrot.slane %v1547, %v1554
        %v1557 = vunpack.c.l.s4 1983009808
        %v1558 = vunpack.c.0.s8 %v1557
        %v1559 = vlaneseq
        %v1560 = vshrl.u32 %v1559, 7
        %v1561 = vsub.s32 %v1558, %v1560
        %v1562 = vrot.slane %v1548, %v1561
        %v1563 = vcombine.low %v1539, %v1555
        %v1564 = vcombine.high %v1539, %v1555
        %v1566 = vunpack.c.l.s4 1934713408
        %v1567 = vunpack.c.0.s8 %v1566
        %v1568 = vlaneseq
        %v1569 = vshrl.u32 %v1568, 7
        %v1570 = vsub.s32 %v1567, %v1569
        %v1571 = vrot.slane %v1563, %v1570
        %v1573 = vunpack.c.l.s4 1934713408
        %v1574 = vunpack.c.0.s8 %v1573
        %v1575 = vlaneseq
        %v1576 = vshrl.u32 %v1575, 7
        %v1577 = vsub.s32 %v1574, %v1576
        %v1578 = vrot.slane %v1564, %v1577
        %v1579 = vcombine.low %v1546, %v1562
        %v1580 = vcombine.high %v1546, %v1562
        %v1582 = vunpack.c.l.s4 1934713408
        %v1583 = vunpack.c.0.s8 %v1582
        %v1584 = vlaneseq
        %v1585 = vshrl.u32 %v1584, 7
        %v1586 = vsub.s32 %v1583, %v1585
        %v1587 = vrot.slane %v1579, %v1586
        %v1589 = vunpack.c.l.s4 1934713408
        %v1590 = vunpack.c.0.s8 %v1589
        %v1591 = vlaneseq
        %v1592 = vshrl.u32 %v1591, 7
        %v1593 = vsub.s32 %v1590, %v1592
        %v1594 = vrot.slane %v1580, %v1593
        %v1595 = vcombine.high %v1571, 0.0
        %v1596 = vcombine.high %v1578, 0.0
        %v1597 = vcombine.high %v1587, 0.0
        %v1598 = vcombine.high %v1594, 0.0
        %v1599 = vcombine.low %v1571, %v1578
        %v1601 = vunpack.c.l.s4 1983009808
        %v1602 = vunpack.c.0.s8 %v1601
        %v1603 = vlaneseq
        %v1604 = vshrl.u32 %v1603, 7
        %v1605 = vsub.s32 %v1602, %v1604
        %v1606 = vrot.slane %v1599, %v1605
        %v1607 = vcombine.low %v1595, %v1596
        %v1609 = vunpack.c.l.s4 1983009808
        %v1610 = vunpack.c.0.s8 %v1609
        %v1611 = vlaneseq
        %v1612 = vshrl.u32 %v1611, 7
        %v1613 = vsub.s32 %v1610, %v1612
        %v1614 = vrot.slane %v1607, %v1613
        %v1615 = vcombine.low %v1587, %v1594
        %v1617 = vunpack.c.l.s4 1983009808
        %v1618 = vunpack.c.0.s8 %v1617
        %v1619 = vlaneseq
        %v1620 = vshrl.u32 %v1619, 7
        %v1621 = vsub.s32 %v1618, %v1620
        %v1622 = vrot.slane %v1615, %v1621
        %v1623 = vcombine.low %v1597, %v1598
        %v1625 = vunpack.c.l.s4 1983009808
        %v1626 = vunpack.c.0.s8 %v1625
        %v1627 = vlaneseq
        %v1628 = vshrl.u32 %v1627, 7
        %v1629 = vsub.s32 %v1626, %v1628
        %v1630 = vrot.slane %v1623, %v1629
        %v1631 = vcombine.low %v1606, %v1614
        %v1632 = vcombine.high %v1606, %v1614
        %v1634 = vunpack.c.l.s4 1934713408
        %v1635 = vunpack.c.0.s8 %v1634
        %v1636 = vlaneseq
        %v1637 = vshrl.u32 %v1636, 7
        %v1638 = vsub.s32 %v1635, %v1637
        %v1639 = vrot.slane %v1631, %v1638
        %v1641 = vunpack.c.l.s4 1934713408
        %v1642 = vunpack.c.0.s8 %v1641
        %v1643 = vlaneseq
        %v1644 = vshrl.u32 %v1643, 7
        %v1645 = vsub.s32 %v1642, %v1644
        %v1646 = vrot.slane %v1632, %v1645
        %v1647 = vcombine.low %v1622, %v1630
        %v1648 = vcombine.high %v1622, %v1630
        %v1650 = vunpack.c.l.s4 1934713408
        %v1651 = vunpack.c.0.s8 %v1650
        %v1652 = vlaneseq
        %v1653 = vshrl.u32 %v1652, 7
        %v1654 = vsub.s32 %v1651, %v1653
        %v1655 = vrot.slane %v1647, %v1654
        %v1657 = vunpack.c.l.s4 1934713408
        %v1658 = vunpack.c.0.s8 %v1657
        %v1659 = vlaneseq
        %v1660 = vshrl.u32 %v1659, 7
        %v1661 = vsub.s32 %v1658, %v1660
        %v1662 = vrot.slane %v1648, %v1661
        %v1663 = vcombine.low %v1639, %v1655
        %v1664 = vcombine.high %v1639, %v1655
        %v1665 = vcombine.low %v1646, %v1662
        %v1666 = vcombine.high %v1646, %v1662
        %1668 = vrot.lane.b32.xlu0 %v1664, 8
        %v1669 = vpop.permute.xlu0 %1668
        %1672 = vrot.lane.b32.xlu0 %v1665, 16
        %v1673 = vpop.permute.xlu0 %1672
        %1676 = vrot.lane.b32.xlu0 %v1666, 24
        %v1677 = vpop.permute.xlu0 %1676
        %v1679 = vsel %vm1109, %v1663, %v1669
        %vm1680 = vcmask 130048
        %v1681 = vsel %vm1680, %v1679, %v1673
        %vm1682 = vcmask 195584
        %v1683 = vsel %vm1682, %v1681, %v1677
        %v1684 = vpack.c.bf16 %v1683, %v1683
        %v1685 = vld [vmem:[%s5] sm:$0xf]
        %v1686 = vld [vmem:[%s5 + $0x4] sm:$0xf]
        %v1687 = vld [vmem:[%s5 + $0x8] sm:$0xf]
        %v1688 = vld [vmem:[%s5 + $0xc] sm:$0xf]
        %v1689 = vld [vmem:[#allocation8] sm:$0x1]
        %v1691 = vlaneseq
        %v1692 = vshrl.u32 %v1691, 7
        %v1693 = vsub.s32 0, %v1692
        %v1694 = vrot.slane %v1689, %v1693
        %v1700 = vunpack.c.l.b16 %v1685
        %v1701 = vunpack.c.l.b16 %v1686
        %v1702 = vunpack.c.l.b16 %v1687
        %v1703 = vunpack.c.l.b16 %v1688
        %v1704 = vpack.c.b16 %v1701, %v1700
        %v1705 = vpack.c.b16 %v1703, %v1702
        %v1709 = vsel %vm554, %v1684, 0
        %1711 = vmatprep.subr.bf16.mxu0 0
        %1712 = vmatpush1.bf16.msra.mxu0 0
        %1713 = vmatprep.subr.bf16.mxu0 0
        %1714 = vmatpush1.bf16.msra.mxu0 0
        %1715 = vmatprep.subr.bf16.mxu0 0
        %1716 = vmatpush1.bf16.msra.mxu0 0
        %1717 = vmatprep.subr.bf16.mxu0 0
        %1718 = vmatpush1.bf16.msra.mxu0 0
        %1719 = vmatprep.subr.bf16.mxu0 0
        %1720 = vmatpush1.bf16.msra.mxu0 0
        %1721 = vmatprep.subr.bf16.mxu0 0
        %1722 = vmatpush1.bf16.msra.mxu0 0
        %1723 = vmatprep.subr.bf16.mxu0 0
        %1724 = vmatpush1.bf16.msra.mxu0 %v1705
        %1725 = vmatprep.subr.bf16.mxu0 0
        %1726 = vmatpush1.bf16.msra.mxu0 %v1704
        %1727 = vmatprep.subr.bf16.mxu0 0
        %1728 = vmatpush2.bf16.msra.mxu0 0
        %1729 = vmatprep.subr.bf16.mxu0 0
        %1730 = vmatpush2.bf16.msra.mxu0 0
        %1731 = vmatprep.subr.bf16.mxu0 0
        %1732 = vmatpush2.bf16.msra.mxu0 0
        %1733 = vmatprep.subr.bf16.mxu0 0
        %1734 = vmatpush2.bf16.msra.mxu0 0
        %1735 = vmatprep.subr.bf16.mxu0 0
        %1736 = vmatpush2.bf16.msra.mxu0 0
        %1737 = vmatprep.subr.bf16.mxu0 0
        %1738 = vmatpush2.bf16.msra.mxu0 0
        %1739 = vmatprep.subr.bf16.mxu0 0
        %1740 = vmatpush2.bf16.msra.mxu0 0
        %1741 = vmatprep.subr.bf16.mxu0 0
        %1742 = vmatpush2.bf16.msra.mxu0 0
        %1743 = vmatprep.mubr.bf16.mxu0 0
        %1744 = vmatmul.mubr.bf16.gmra.mxu0 %v1709
        %v1745 = vpop.f32.mrf.mxu0
        %v1746 = vadd.f32 %v1694, %v1745
        %v1747 = vpop.f32.mrf.mxu0
        %v1748 = vpop.f32.mrf.mxu0
        %v1749 = vpop.f32.mrf.mxu0
        %1750 = vdwg.mxu0
        %v1751 = vadd.f32 %v1746, %v551
        %v1752 = vld [vmem:[#allocation10] sm:$0x1]
        %v1753 = vld [vmem:[#allocation11] sm:$0x1]
        %v1754 = vsel %vm554, %v1751, 0.0
        %1755 = vadd.xlane.f32.xlu0 %v1754
        %v1756 = vpop.xlane.xlu0 %1755
        %v1757 = vmul.f32 %v1756, %v558
        %v1758 = vsub.f32 %v1751, %v1757
        %v1759 = vmul.f32 %v1758, %v1758
        %v1760 = vsel %vm554, %v1759, 0.0
        %1761 = vadd.xlane.f32.xlu0 %v1760
        %v1762 = vpop.xlane.xlu0 %1761
        %v1763 = vmul.f32 %v1762, %v558
        %v1764 = vadd.f32 %v1763, 1e-12
        %v1765 = vrsqrt.pop %v1764
        %v1766 = vmul.f32 %v1758, %v1765
        %v1768 = vlaneseq
        %v1769 = vshrl.u32 %v1768, 7
        %v1770 = vsub.s32 0, %v1769
        %v1771 = vrot.slane %v1752, %v1770
        %v1773 = vmul.f32 %v1766, %v1771
        %v1775 = vlaneseq
        %v1776 = vshrl.u32 %v1775, 7
        %v1777 = vsub.s32 0, %v1776
        %v1778 = vrot.slane %v1753, %v1777
        %v1780 = vadd.f32 %v1773, %v1778
        %v1781 = vpack.c.bf16 %v1780, %v1780
        %v1782 = vld [vmem:[%s9] sm:$0xf]
        %v1783 = vld [vmem:[%s9 + $0x4] sm:$0xf]
        %v1784 = vld [vmem:[%s9 + $0x8] sm:$0xf]
        %v1785 = vld [vmem:[%s9 + $0xc] sm:$0xf]
        %v1786 = vld [vmem:[%s10] sm:$0x1]
        %v1788 = vlaneseq
        %v1789 = vshrl.u32 %v1788, 7
        %v1790 = vsub.s32 0, %v1789
        %v1791 = vrot.slane %v1786, %v1790
        %v1797 = vunpack.c.l.b16 %v1782
        %v1798 = vunpack.c.l.b16 %v1783
        %v1799 = vunpack.c.l.b16 %v1784
        %v1800 = vunpack.c.l.b16 %v1785
        %v1801 = vpack.c.b16 %v1798, %v1797
        %v1802 = vpack.c.b16 %v1800, %v1799
        %v1806 = vsel %vm554, %v1781, 0
        %1808 = vmatprep.subr.bf16.mxu0 0
        %1809 = vmatpush1.bf16.msra.mxu0 0
        %1810 = vmatprep.subr.bf16.mxu0 0
        %1811 = vmatpush1.bf16.msra.mxu0 0
        %1812 = vmatprep.subr.bf16.mxu0 0
        %1813 = vmatpush1.bf16.msra.mxu0 0
        %1814 = vmatprep.subr.bf16.mxu0 0
        %1815 = vmatpush1.bf16.msra.mxu0 0
        %1816 = vmatprep.subr.bf16.mxu0 0
        %1817 = vmatpush1.bf16.msra.mxu0 0
        %1818 = vmatprep.subr.bf16.mxu0 0
        %1819 = vmatpush1.bf16.msra.mxu0 0
        %1820 = vmatprep.subr.bf16.mxu0 0
        %1821 = vmatpush1.bf16.msra.mxu0 %v1802
        %1822 = vmatprep.subr.bf16.mxu0 0
        %1823 = vmatpush1.bf16.msra.mxu0 %v1801
        %1824 = vmatprep.subr.bf16.mxu0 0
        %1825 = vmatpush2.bf16.msra.mxu0 0
        %1826 = vmatprep.subr.bf16.mxu0 0
        %1827 = vmatpush2.bf16.msra.mxu0 0
        %1828 = vmatprep.subr.bf16.mxu0 0
        %1829 = vmatpush2.bf16.msra.mxu0 0
        %1830 = vmatprep.subr.bf16.mxu0 0
        %1831 = vmatpush2.bf16.msra.mxu0 0
        %1832 = vmatprep.subr.bf16.mxu0 0
        %1833 = vmatpush2.bf16.msra.mxu0 0
        %1834 = vmatprep.subr.bf16.mxu0 0
        %1835 = vmatpush2.bf16.msra.mxu0 0
        %1836 = vmatprep.subr.bf16.mxu0 0
        %1837 = vmatpush2.bf16.msra.mxu0 0
        %1838 = vmatprep.subr.bf16.mxu0 0
        %1839 = vmatpush2.bf16.msra.mxu0 0
        %1840 = vmatprep.mubr.bf16.mxu0 0
        %1841 = vmatmul.mubr.bf16.gmra.mxu0 %v1806
        %v1842 = vpop.f32.mrf.mxu0
        %v1843 = vadd.f32 %v1791, %v1842
        %v1844 = vpop.f32.mrf.mxu0
        %v1845 = vpop.f32.mrf.mxu0
        %v1846 = vpop.f32.mrf.mxu0
        %1847 = vdwg.mxu0
        %v1848 = vmax.f32 %v1843, 0.0
        %v1849 = vpack.c.bf16 %v1848, %v1848
        %v1850 = vld [vmem:[%s11] sm:$0xf]
        %v1851 = vld [vmem:[%s11 + $0x4] sm:$0xf]
        %v1852 = vld [vmem:[%s11 + $0x8] sm:$0xf]
        %v1853 = vld [vmem:[%s11 + $0xc] sm:$0xf]
        %v1854 = vld [vmem:[%s11 + $0x10] sm:$0xf]
        %v1855 = vld [vmem:[%s11 + $0x14] sm:$0xf]
        %v1856 = vld [vmem:[%s11 + $0x18] sm:$0xf]
        %v1857 = vld [vmem:[%s11 + $0x1c] sm:$0xf]
        %v1858 = vld [vmem:[%s12] sm:$0x1]
        %v1860 = vlaneseq
        %v1861 = vshrl.u32 %v1860, 7
        %v1862 = vsub.s32 0, %v1861
        %v1863 = vrot.slane %v1858, %v1862
        %v1873 = vunpack.c.l.b16 %v1850
        %v1874 = vunpack.c.l.b16 %v1851
        %v1875 = vunpack.c.l.b16 %v1852
        %v1876 = vunpack.c.l.b16 %v1853
        %v1877 = vunpack.c.l.b16 %v1854
        %v1878 = vunpack.c.l.b16 %v1855
        %v1879 = vunpack.c.l.b16 %v1856
        %v1880 = vunpack.c.l.b16 %v1857
        %v1881 = vpack.c.b16 %v1874, %v1873
        %v1882 = vpack.c.b16 %v1876, %v1875
        %v1883 = vpack.c.b16 %v1878, %v1877
        %v1884 = vpack.c.b16 %v1880, %v1879
        %vm1889 = vcmask 523264
        %v1891 = vsel %vm1889, %v1849, 0
        %1893 = vmatprep.subr.bf16.mxu0 0
        %1894 = vmatpush1.bf16.msra.mxu0 0
        %1895 = vmatprep.subr.bf16.mxu0 0
        %1896 = vmatpush1.bf16.msra.mxu0 0
        %1897 = vmatprep.subr.bf16.mxu0 0
        %1898 = vmatpush1.bf16.msra.mxu0 0
        %1899 = vmatprep.subr.bf16.mxu0 0
        %1900 = vmatpush1.bf16.msra.mxu0 0
        %1901 = vmatprep.subr.bf16.mxu0 0
        %1902 = vmatpush1.bf16.msra.mxu0 %v1884
        %1903 = vmatprep.subr.bf16.mxu0 0
        %1904 = vmatpush1.bf16.msra.mxu0 %v1883
        %1905 = vmatprep.subr.bf16.mxu0 0
        %1906 = vmatpush1.bf16.msra.mxu0 %v1882
        %1907 = vmatprep.subr.bf16.mxu0 0
        %1908 = vmatpush1.bf16.msra.mxu0 %v1881
        %1909 = vmatprep.subr.bf16.mxu0 0
        %1910 = vmatpush2.bf16.msra.mxu0 0
        %1911 = vmatprep.subr.bf16.mxu0 0
        %1912 = vmatpush2.bf16.msra.mxu0 0
        %1913 = vmatprep.subr.bf16.mxu0 0
        %1914 = vmatpush2.bf16.msra.mxu0 0
        %1915 = vmatprep.subr.bf16.mxu0 0
        %1916 = vmatpush2.bf16.msra.mxu0 0
        %1917 = vmatprep.subr.bf16.mxu0 0
        %1918 = vmatpush2.bf16.msra.mxu0 0
        %1919 = vmatprep.subr.bf16.mxu0 0
        %1920 = vmatpush2.bf16.msra.mxu0 0
        %1921 = vmatprep.subr.bf16.mxu0 0
        %1922 = vmatpush2.bf16.msra.mxu0 0
        %1923 = vmatprep.subr.bf16.mxu0 0
        %1924 = vmatpush2.bf16.msra.mxu0 0
        %1925 = vmatprep.mubr.bf16.mxu0 0
        %1926 = vmatmul.mubr.bf16.gmra.mxu0 %v1891
        %v1927 = vpop.f32.mrf.mxu0
        %v1928 = vadd.f32 %v1863, %v1927
        %v1929 = vpop.f32.mrf.mxu0
        %v1930 = vpop.f32.mrf.mxu0
        %v1931 = vpop.f32.mrf.mxu0
        %1932 = vdwg.mxu0
        %v1933 = vadd.f32 %v1928, %v1751
        %1934 = vst.msk [vmem:[%s538] sm:$0xff] %vm554, %v1933
        %s1935 = sand.u32 %s322, 1
        %s1936 = scalar_lea.sflag [#allocation4], %s1935
        %s1937 = sand.u32 %s322, 1
        %s1938 = smul.addr %s1937, 8
        %s1939 = scalar_lea.vmem [#allocation13], %s1938
        %s1940 = sand.u32 %s348, 1
        %s1941 = scalar_lea.sflag [#allocation15], %s1940
        %s1942 = sand.u32 %s348, 1
        %s1943 = smul.addr %s1942, 8
        %s1944 = scalar_lea.vmem [#allocation14], %s1943
        // Predicated region
        $region97: #{tpu_custom_call.1} parent=71 // pred_check
          %p1945 = pneg %p332
        $region98: #{tpu_custom_call.1} parent=71 // pred_check_branch
          %1947 = sbr.rel (%p1945) target = $region100
        $region99: #{tpu_custom_call.1} parent=71 // pred_region
          %s1949 = ssub.s32 128, 128
          %1950 = vsyncadd %s1936, %s1949
          %s1951 = smul.addr %s36, 128
          %s1952 = scalar_lea.hbm %s13, %s1951
          %s1954 = sshll.u32 %s1939, 4
          %s1955 = int_to_ptr.vmem [resolvable:$true] %s1954
          %1957 = dma.vmem_to_hbm [thread:$0]  %s1955, 128, %s1952, %s1936
        $region100: #{tpu_custom_call.1} parent=71 // pred_fallthru
          _
        // Predicated region
        $region101: #{tpu_custom_call.1} parent=71 // pred_check
          %p1958 = pneg %p358
        $region102: #{tpu_custom_call.1} parent=71 // pred_check_branch
          %1960 = sbr.rel (%p1958) target = $region104
        $region103: #{tpu_custom_call.1} parent=71 // pred_region
          %s1962 = ssub.s32 128, 128
          %1963 = vsyncadd %s1941, %s1962
          %s1964 = smul.addr %s36, 128
          %s1965 = scalar_lea.hbm %s14, %s1964
          %s1967 = sshll.u32 %s1944, 4
          %s1968 = int_to_ptr.vmem [resolvable:$true] %s1967
          %1970 = dma.vmem_to_hbm [thread:$0]  %s1968, 128, %s1965, %s1941
        $region104: #{tpu_custom_call.1} parent=71 // pred_fallthru
          _
      $region72: #{tpu_custom_call.1} parent=5 // pred_fallthru
        _
      %p1971 = scmp.le.s32.totalorder 2, %s31
      // Predicated region
      $region105: #{tpu_custom_call.1} parent=5 // pred_check
        %p1972 = pneg %p1971
      $region106: #{tpu_custom_call.1} parent=5 // pred_check_branch
        %1974 = sbr.rel (%p1972) target = $region108
      $region107: #{tpu_custom_call.1} parent=5 // pred_region
        %s1975 = ssub.s32 %s31, 2
        // Predicated region
        $region109: #{tpu_custom_call.1} parent=107 // pred_check
          %p1976 = pneg %p338
        $region110: #{tpu_custom_call.1} parent=107 // pred_check_branch
          %1978 = sbr.rel (%p1976) target = $region112
        $region111: #{tpu_custom_call.1} parent=107 // pred_region
          %s1979 = sand.u32 %s323, 1
          %s1980 = scalar_lea.sflag [#allocation4], %s1979
          %s1981 = sand.u32 %s323, 1
          %s1982 = smul.addr %s1981, 8
          %s1983 = scalar_lea.vmem [#allocation13], %s1982
          %1984 = dma.done %s1980, 128
        $region112: #{tpu_custom_call.1} parent=107 // pred_fallthru
          _
        // Predicated region
        $region113: #{tpu_custom_call.1} parent=107 // pred_check
          %p1985 = pneg %p364
        $region114: #{tpu_custom_call.1} parent=107 // pred_check_branch
          %1987 = sbr.rel (%p1985) target = $region116
        $region115: #{tpu_custom_call.1} parent=107 // pred_region
          %s1988 = sand.u32 %s349, 1
          %s1989 = scalar_lea.sflag [#allocation15], %s1988
          %s1990 = sand.u32 %s349, 1
          %s1991 = smul.addr %s1990, 8
          %s1992 = scalar_lea.vmem [#allocation14], %s1991
          %1993 = dma.done %s1989, 128
        $region116: #{tpu_custom_call.1} parent=107 // pred_fallthru
          _
      $region108: #{tpu_custom_call.1} parent=5 // pred_fallthru
        _
    $region6: #{tpu_custom_call.1} parent=1 // loop_footer
      %s35 = sadd.s32 1, %s31
    $region7: #{tpu_custom_call.1} parent=1 // loop_footer_branch
      %30 = sbr.rel target = $region3
    $region8: #{tpu_custom_call.1} parent=1 // loop_exit
      _
    %1994 = vsyncpa [#allocation3], 1
    %s1995 = scalar_lea.sflag [#allocation3], 1
    %1996 = vsyncpa %s1995, 1
    %1997 = vsyncpa [#allocation6], 1
    %1998 = vsyncpa [#allocation9], 1
    %1999 = vsyncpa [#allocation12], 1
    %2000 = vsyncpa [#allocation4], 1
    %s2001 = scalar_lea.sflag [#allocation4], 1
    %2002 = vsyncpa %s2001, 1
    %2003 = vsyncpa [#allocation15], 1
    %s2004 = scalar_lea.sflag [#allocation15], 1
    %2005 = vsyncpa %s2004, 1

</llo_original>
